<compile_context>
chip_gen: v7x
topology: tpu7x:2x2x1
jax: 0.10.0
libtpu: 0.0.40
codegen_flags: <defaults>
</compile_context>

<pallas_src>
import functools
import math

import jax
import jax.numpy as jnp
from jax.experimental import pallas as pl
from jax.experimental.pallas import tpu as pltpu


def _rup(x, m):
    return ((x + m - 1) // m) * m


# ----------------------------- Pallas kernel -----------------------------

def _layer_norm(x, g, b, d_real, eps=1e-5):
    # Padded lanes of x are exactly zero and g/b are zero-padded, so sums over
    # the full lane width equal sums over the d_real real channels.
    inv_n = 1.0 / d_real
    mean = jnp.sum(x, axis=-1, keepdims=True) * inv_n
    ex2 = jnp.sum(x * x, axis=-1, keepdims=True) * inv_n
    var = ex2 - mean * mean
    return (x - mean) * jax.lax.rsqrt(var + eps) * g + b


def vit_kernel(patches_ref, base_ref, projw_ref, bias_ref,
               wqkv_ref, bqkv_ref, wo_ref, w1_ref, b1_ref, w2_ref, vecs_ref,
               headw_ref, headb_ref,
               logits_ref, x_scr, *, num_heads, d_real, rb_head):
    # grid = (row_blocks [parallel], layers [arbitrary]); residual in scratch.
    l = pl.program_id(1)
    n_layers = pl.num_programs(1)

    def mm(a, w):                                    # bf16 matmul, f32 accumulate
        return jnp.dot(a.astype(jnp.bfloat16), w,
                       preferred_element_type=jnp.float32)

    @pl.when(l == 0)
    def _():
        # Fused patch embedding: im2col conv as one lane-dense MXU matmul.
        # base = pos embedding (+ cls token on s=0 rows, + conv bias on token
        # rows), precomputed host-side (exact algebra).
        x_scr[...] = mm(patches_ref[...], projw_ref[...]) + base_ref[...]

    x = x_scr[...]                                   # (R, Dp) f32 residual stream
    d_p = x.shape[-1]
    hd = d_real // num_heads

    vecs = vecs_ref[0]                               # (8, Dp) packed per-layer vectors
    bo, g1, be1 = vecs[0:1], vecs[1:2], vecs[2:3]
    b2, g2, be2 = vecs[3:4], vecs[4:5], vecs[5:6]

    # Fused QKV projection: one (R, Dp) x (Dp, 3Dp) matmul; 1/sqrt(hd) is
    # already folded into the Q columns / bias.
    qkv = mm(x, wqkv_ref[0]) + bqkv_ref[0]           # (R, 3*Dp)

    bias = bias_ref[...]                             # block-diag (same token s) mask
    heads = []
    for h in range(num_heads):                       # TODO(synk): heads unrolled; a fully
        lo = h * hd                                  # batched form needs a lane-dim reshape
        qh = qkv[:, lo:lo + hd].astype(jnp.bfloat16)          # we avoid for robustness.
        kh = qkv[:, d_p + lo:d_p + lo + hd].astype(jnp.bfloat16)
        vh = qkv[:, 2 * d_p + lo:2 * d_p + lo + hd].astype(jnp.bfloat16)
        sc = jax.lax.dot_general(qh, kh, (((1,), (1,)), ((), ())),
                                 preferred_element_type=jnp.float32)   # (R, R)
        sc = sc + bias
        sc = sc - jnp.max(sc, axis=-1, keepdims=True)
        p = jnp.exp(sc)
        p = p * pl.reciprocal(jnp.sum(p, axis=-1, keepdims=True), approx=True)
        heads.append(jnp.dot(p.astype(jnp.bfloat16), vh,
                             preferred_element_type=jnp.float32))      # (R, hd)
    ctx = jnp.concatenate(heads, axis=-1)            # (R, d_real)
    attn = mm(ctx, wo_ref[0]) + bo                   # (R, Dp)

    x1 = _layer_norm(x + attn, g1, be1, d_real)
    h1 = jnp.maximum(mm(x1, w1_ref[0]) + b1_ref[0], 0.0)
    ffn = mm(h1, w2_ref[0]) + b2
    x2 = _layer_norm(x1 + ffn, g2, be2, d_real)

    x_scr[...] = x2

    @pl.when(l == n_layers - 1)
    def _():
        # Fused classifier head. Rows [0:B] of row-block 0 are the cls tokens
        # (s = 0); other blocks produce throwaway rows that are never read.
        logits_ref[...] = (jnp.dot(x2[:rb_head].astype(jnp.bfloat16), headw_ref[...],
                                   preferred_element_type=jnp.float32)
                           + headb_ref[...])


# ----------------------------- pallas_call wrapper -----------------------------

def _pick_row_block(n_rows, batch):
    # Row blocks must be multiples of the batch (so same-token attention
    # groups stay intact) and of 8 (sublane alignment). Use 2 blocks when
    # possible so the 'parallel' grid axis can shard across TensorCores.
    base = (batch * 8) // math.gcd(batch, 8)
    half = n_rows // 2
    if n_rows % 2 == 0 and half > 0 and half % base == 0:
        return half
    return n_rows


def extract_patches(x, patch_size):
    # x: NCHW; patches in row-major (gy, gx) order, features ordered (c, dy, dx)
    # to match Conv2d weight flattening.
    B, C, H, W = x.shape
    p = patch_size
    gh, gw = H // p, W // p
    x = x.reshape(B, C, gh, p, gw, p)
    x = x.transpose(0, 2, 4, 1, 3, 5)                # (B, gh, gw, C, p, p)
    return x.reshape(B, gh * gw, C * p * p)


def vit_forward(cfg, params, x):
    B = x.shape[0]
    d_p, ck, ck_p, s_p, c_p = cfg['d_p'], cfg['ck'], cfg['ck_p'], cfg['s_p'], cfg['c_p']
    ff_p, num_layers = cfg['ff_p'], cfg['layers']

    patches = extract_patches(x, cfg['patch'])                     # (B, P, ck)
    P = patches.shape[1]
    n_rows = s_p * B
    n_tok_rows = P * B

    # Row layout r = s*B + b; token rows start at row B (s=0 rows are cls).
    patches_pm = jnp.transpose(patches, (1, 0, 2)).reshape(n_tok_rows, ck)
    patches_full = jnp.zeros((n_rows, ck_p), jnp.float32)
    patches_full = patches_full.at[B:B + n_tok_rows, :ck].set(patches_pm)

    base = jnp.repeat(params['pos'], B, axis=0)                    # (s_p*B, d_p)
    base = base.at[:B, :].add(jnp.broadcast_to(params['cls'], (B, d_p)))
    base = base.at[B:B + n_tok_rows, :].add(
        jnp.broadcast_to(params['proj_b'], (n_tok_rows, d_p)))

    row_block = _pick_row_block(n_rows, B)
    num_rb = n_rows // row_block
    # Additive mask: rows attend only within their own token (same s) group of
    # B rows. Blocks are batch-aligned, so the mask is identical per block.
    loc = jnp.arange(row_block) // B
    attn_bias = jnp.where(loc[:, None] == loc[None, :], 0.0, -1e30).astype(jnp.float32)

    rb_head = _rup(B, 8)
    enc = params['enc']
    kernel = functools.partial(vit_kernel, num_heads=cfg['heads'],
                               d_real=cfg['d'], rb_head=rb_head)

    def wspec(shape):
        # Layer-stacked weights: block l streamed per grid step (double-buffered).
        return pl.BlockSpec((1,) + shape, lambda r, l: (l, 0, 0))

    in_specs = [
        pl.BlockSpec((row_block, ck_p), lambda r, l: (r, 0)),        # patches (im2col)
        pl.BlockSpec((row_block, d_p), lambda r, l: (r, 0)),         # base (pos+cls+bias)
        pl.BlockSpec((ck_p, d_p), lambda r, l: (0, 0)),              # conv proj weight
        pl.BlockSpec((row_block, row_block), lambda r, l: (0, 0)),   # attn mask bias
        wspec((d_p, 3 * d_p)),      # wqkv (bf16)
        wspec((1, 3 * d_p)),        # bqkv
        wspec((cfg['d'], d_p)),     # wo (bf16)
        wspec((d_p, ff_p)),         # w1 (bf16)
        wspec((1, ff_p)),           # b1
        wspec((ff_p, d_p)),         # w2 (bf16)
        wspec((8, d_p)),            # packed vectors: bo,g1,be1,b2,g2,be2
        pl.BlockSpec((d_p, c_p), lambda r, l: (0, 0)),               # head weight (bf16)
        pl.BlockSpec((1, c_p), lambda r, l: (0, 0)),                 # head bias
    ]
    out_spec = pl.BlockSpec((rb_head, c_p), lambda r, l: (r, 0))

    logits_full = pl.pallas_call(
        kernel,
        out_shape=jax.ShapeDtypeStruct((num_rb * rb_head, c_p), jnp.float32),
        grid_spec=pltpu.PrefetchScalarGridSpec(
            num_scalar_prefetch=0,
            grid=(num_rb, num_layers),
            in_specs=in_specs,
            out_specs=out_spec,
            scratch_shapes=[pltpu.VMEM((row_block, d_p), jnp.float32)]),
        compiler_params=pltpu.CompilerParams(
            dimension_semantics=("parallel", "arbitrary")),
    )(patches_full, base, params['proj_w'], attn_bias,
      enc['wqkv'], enc['bqkv'], enc['wo'], enc['w1'], enc['b1'], enc['w2'],
      enc['vecs'], params['head_w'], params['head_b'])

    return logits_full[:B, :cfg['classes']]


# ----------------------------- params -----------------------------

def init_params(key, *, img_size, patch_size, in_channels, embed_dim,
                num_heads, num_layers, num_classes):
    p = patch_size
    n_patches = (img_size // p) ** 2
    ck = in_channels * p * p
    ff = 4 * embed_dim
    hd = embed_dim // num_heads
    D = embed_dim

    d_p = _rup(D, 128)
    ck_p = _rup(ck, 128)
    ff_p = _rup(ff, 128)
    c_p = _rup(num_classes, 128)
    s = n_patches + 1
    s_p = _rup(s, 8)

    cfg = dict(patch=p, d=D, d_p=d_p, ck=ck, ck_p=ck_p, ff=ff, ff_p=ff_p,
               classes=num_classes, c_p=c_p, s=s, s_p=s_p,
               heads=num_heads, layers=num_layers)

    ks = iter(jax.random.split(key, 8 + 8 * num_layers))

    def nrm(shape, scale=0.02):
        return (scale * jax.random.normal(next(ks), shape)).astype(jnp.float32)

    def pad2(a, rows, cols):
        out = jnp.zeros((rows, cols), jnp.float32)
        return out.at[:a.shape[0], :a.shape[1]].set(a)

    # Conv2d(in, D, kernel=p, stride=p) weight (D, C, p, p) -> im2col matrix (CK, D).
    proj_w = nrm((D, in_channels, p, p)).reshape(D, ck).T

    params = {
        'proj_w': pad2(proj_w, ck_p, d_p).astype(jnp.bfloat16),
        'proj_b': pad2(nrm((1, D)), 1, d_p),
        # PyTorch inits cls/pos to zeros; small random here so those paths are
        # numerically exercised (deterministic synthetic init).
        'cls': pad2(nrm((1, D)), 1, d_p),
        'pos': pad2(nrm((s, D)), s_p, d_p),
        'head_w': pad2(nrm((num_classes, D)).T, d_p, c_p).astype(jnp.bfloat16),
        'head_b': pad2(nrm((1, num_classes)), 1, c_p),
    }

    scale = 1.0 / math.sqrt(hd)
    acc = {k: [] for k in ['wqkv', 'bqkv', 'wo', 'w1', 'b1', 'w2', 'vecs']}
    for _ in range(num_layers):
        in_w = nrm((3 * D, D))
        in_b = nrm((3 * D,))
        wq = in_w[:D].T * scale            # fold 1/sqrt(hd) into Q projection
        wk = in_w[D:2 * D].T
        wv = in_w[2 * D:].T
        bq = in_b[:D] * scale
        bk = in_b[D:2 * D]
        bv = in_b[2 * D:]
        wqkv = jnp.zeros((d_p, 3 * d_p), jnp.float32)
        wqkv = wqkv.at[:D, 0:D].set(wq)
        wqkv = wqkv.at[:D, d_p:d_p + D].set(wk)
        wqkv = wqkv.at[:D, 2 * d_p:2 * d_p + D].set(wv)
        bqkv = jnp.zeros((1, 3 * d_p), jnp.float32)
        bqkv = bqkv.at[0, 0:D].set(bq)
        bqkv = bqkv.at[0, d_p:d_p + D].set(bk)
        bqkv = bqkv.at[0, 2 * d_p:2 * d_p + D].set(bv)

        acc['wqkv'].append(wqkv.astype(jnp.bfloat16))
        acc['bqkv'].append(bqkv)
        acc['wo'].append(pad2(nrm((D, D)).T, D, d_p).astype(jnp.bfloat16))
        acc['w1'].append(pad2(nrm((ff, D)).T, d_p, ff_p).astype(jnp.bfloat16))
        acc['b1'].append(pad2(nrm((1, ff)), 1, ff_p))
        acc['w2'].append(pad2(nrm((D, ff)).T, ff_p, d_p).astype(jnp.bfloat16))

        # Packed per-layer vectors: [bo, ln1_gamma, ln1_beta, b2, ln2_gamma, ln2_beta].
        vec = jnp.zeros((8, d_p), jnp.float32)
        vec = vec.at[0].set(pad2(nrm((1, D)), 1, d_p)[0])   # attn out-proj bias
        vec = vec.at[1, :D].set(1.0)                        # ln1 gamma
        vec = vec.at[3].set(pad2(nrm((1, D)), 1, d_p)[0])   # ffn out bias
        vec = vec.at[4, :D].set(1.0)                        # ln2 gamma
        acc['vecs'].append(vec)                             # rows 2/5 (betas) stay 0

    params['enc'] = {k: jnp.stack(v) for k, v in acc.items()}
    return cfg, params


if __name__ == "__main__":
    IMG, PATCH, CIN = 16, 4, 4
    EMBED, HEADS, LAYERS, CLASSES = 32, 4, 2, 10
    B = 2

    key = jax.random.PRNGKey(0)
    pkey, xkey = jax.random.split(key)
    cfg, params = init_params(pkey, img_size=IMG, patch_size=PATCH, in_channels=CIN,
                              embed_dim=EMBED, num_heads=HEADS, num_layers=LAYERS,
                              num_classes=CLASSES)
    x = jax.random.normal(xkey, (B, CIN, IMG, IMG), dtype=jnp.float32)

    fwd = jax.jit(functools.partial(vit_forward, cfg))
    logits = fwd(params, x)
    jax.block_until_ready(logits)
    assert logits.shape == (B, CLASSES), logits.shape
    print("KERNEL_OK")
</pallas_src>

<mosaic_0001>
module attributes {stable_mosaic.version = 11 : i64} {
  func.func @vit_kernel(%arg0: i32, %arg1: i32, %arg2: memref<24x128xf32, #tpu.memory_space<vmem>>, %arg3: memref<24x128xf32, #tpu.memory_space<vmem>>, %arg4: memref<128x128xbf16, #tpu.memory_space<vmem>>, %arg5: memref<24x24xf32, #tpu.memory_space<vmem>>, %arg6: memref<1x128x384xbf16, #tpu.memory_space<vmem>>, %arg7: memref<1x1x384xf32, #tpu.memory_space<vmem>>, %arg8: memref<1x32x128xbf16, #tpu.memory_space<vmem>>, %arg9: memref<1x128x128xbf16, #tpu.memory_space<vmem>>, %arg10: memref<1x1x128xf32, #tpu.memory_space<vmem>>, %arg11: memref<1x128x128xbf16, #tpu.memory_space<vmem>>, %arg12: memref<1x8x128xf32, #tpu.memory_space<vmem>>, %arg13: memref<128x128xbf16, #tpu.memory_space<vmem>>, %arg14: memref<1x128xf32, #tpu.memory_space<vmem>>, %arg15: memref<8x128xf32, #tpu.memory_space<vmem>>, %arg16: memref<24x128xf32, #tpu.memory_space<vmem>>) attributes {dimension_semantics = [#tpu.dimension_semantics<parallel>, #tpu.dimension_semantics<arbitrary>], iteration_bounds = array<i64: 2, 2>, scalar_prefetch = 0 : i64, scratch_operands = 1 : i64, tpu.core_type = #tpu.core_type<tc>, window_params = [{transform_indices = @transform_0, window_bounds = array<i64: 24, 128>}, {transform_indices = @transform_1, window_bounds = array<i64: 24, 128>}, {pipeline_mode = #tpu.pipeline_mode<synchronous>, transform_indices = @transform_2, window_bounds = array<i64: 128, 128>}, {pipeline_mode = #tpu.pipeline_mode<synchronous>, transform_indices = @transform_3, window_bounds = array<i64: 24, 24>}, {transform_indices = @transform_4, window_bounds = array<i64: 1, 128, 384>}, {transform_indices = @transform_5, window_bounds = array<i64: 1, 1, 384>}, {transform_indices = @transform_6, window_bounds = array<i64: 1, 32, 128>}, {transform_indices = @transform_7, window_bounds = array<i64: 1, 128, 128>}, {transform_indices = @transform_8, window_bounds = array<i64: 1, 1, 128>}, {transform_indices = @transform_9, window_bounds = array<i64: 1, 128, 128>}, {transform_indices = @transform_10, window_bounds = array<i64: 1, 8, 128>}, {pipeline_mode = #tpu.pipeline_mode<synchronous>, transform_indices = @transform_11, window_bounds = array<i64: 128, 128>}, {pipeline_mode = #tpu.pipeline_mode<synchronous>, transform_indices = @transform_12, window_bounds = array<i64: 1, 128>}, {transform_indices = @transform_13, window_bounds = array<i64: 8, 128>}]} {
    %c0_i32 = arith.constant 0 : i32
    %0 = arith.cmpi eq, %arg1, %c0_i32 : i32
    %1 = arith.extui %0 : i1 to i32
    %c0_i32_0 = arith.constant 0 : i32
    %2 = arith.cmpi ne, %1, %c0_i32_0 : i32
    scf.if %2 {
      %c0_58 = arith.constant 0 : index
      %c0_59 = arith.constant 0 : index
      %174 = vector.load %arg2[%c0_58, %c0_59] : memref<24x128xf32, #tpu.memory_space<vmem>>, vector<24x128xf32>
      %c0_60 = arith.constant 0 : index
      %c0_61 = arith.constant 0 : index
      %175 = vector.load %arg4[%c0_60, %c0_61] : memref<128x128xbf16, #tpu.memory_space<vmem>>, vector<128x128xbf16>
      %176 = arith.truncf %174 : vector<24x128xf32> to vector<24x128xbf16>
      %cst_62 = arith.constant dense<0.000000e+00> : vector<24x128xf32>
      %177 = tpu.matmul %176, %175, %cst_62 {dimension_numbers = #tpu.dot_dimension_numbers<[1], [0], [0], [1], [0, 0, 1, 1], [], []>} : vector<24x128xbf16>, vector<128x128xbf16>, vector<24x128xf32> -> vector<24x128xf32>
      %c0_63 = arith.constant 0 : index
      %c0_64 = arith.constant 0 : index
      %178 = vector.load %arg3[%c0_63, %c0_64] : memref<24x128xf32, #tpu.memory_space<vmem>>, vector<24x128xf32>
      %179 = arith.addf %177, %178 : vector<24x128xf32>
      %c0_65 = arith.constant 0 : index
      %c0_66 = arith.constant 0 : index
      %180 = vector.load %arg16[%c0_65, %c0_66] : memref<24x128xf32, #tpu.memory_space<vmem>>, vector<24x128xf32>
      tpu.vector_store %arg16[%c0_65, %c0_66], %179 {strides = array<i32>} : memref<24x128xf32, #tpu.memory_space<vmem>>, vector<24x128xf32>,
    } else {
    }
    %c0 = arith.constant 0 : index
    %c0_1 = arith.constant 0 : index
    %3 = vector.load %arg16[%c0, %c0_1] : memref<24x128xf32, #tpu.memory_space<vmem>>, vector<24x128xf32>
    %c0_2 = arith.constant 0 : index
    %c0_3 = arith.constant 0 : index
    %c0_4 = arith.constant 0 : index
    %4 = vector.load %arg12[%c0_2, %c0_3, %c0_4] : memref<1x8x128xf32, #tpu.memory_space<vmem>>, vector<1x8x128xf32>
    %5 = vector.shape_cast %4 : vector<1x8x128xf32> to vector<8x128xf32>
    %6 = vector.extract_strided_slice %5 {offsets = [0, 0], sizes = [1, 128], strides = [1, 1]} : vector<8x128xf32> to vector<1x128xf32>
    %7 = vector.extract_strided_slice %5 {offsets = [1, 0], sizes = [1, 128], strides = [1, 1]} : vector<8x128xf32> to vector<1x128xf32>
    %8 = vector.extract_strided_slice %5 {offsets = [2, 0], sizes = [1, 128], strides = [1, 1]} : vector<8x128xf32> to vector<1x128xf32>
    %9 = vector.extract_strided_slice %5 {offsets = [3, 0], sizes = [1, 128], strides = [1, 1]} : vector<8x128xf32> to vector<1x128xf32>
    %10 = vector.extract_strided_slice %5 {offsets = [4, 0], sizes = [1, 128], strides = [1, 1]} : vector<8x128xf32> to vector<1x128xf32>
    %11 = vector.extract_strided_slice %5 {offsets = [5, 0], sizes = [1, 128], strides = [1, 1]} : vector<8x128xf32> to vector<1x128xf32>
    %c0_5 = arith.constant 0 : index
    %c0_6 = arith.constant 0 : index
    %c0_7 = arith.constant 0 : index
    %12 = vector.load %arg6[%c0_5, %c0_6, %c0_7] : memref<1x128x384xbf16, #tpu.memory_space<vmem>>, vector<1x128x384xbf16>
    %13 = vector.shape_cast %12 : vector<1x128x384xbf16> to vector<128x384xbf16>
    %14 = arith.truncf %3 : vector<24x128xf32> to vector<24x128xbf16>
    %cst = arith.constant dense<0.000000e+00> : vector<24x384xf32>
    %15 = tpu.matmul %14, %13, %cst {dimension_numbers = #tpu.dot_dimension_numbers<[1], [0], [0], [1], [0, 0, 1, 1], [], []>} : vector<24x128xbf16>, vector<128x384xbf16>, vector<24x384xf32> -> vector<24x384xf32>
    %c0_8 = arith.constant 0 : index
    %c0_9 = arith.constant 0 : index
    %c0_10 = arith.constant 0 : index
    %16 = vector.load %arg7[%c0_8, %c0_9, %c0_10] : memref<1x1x384xf32, #tpu.memory_space<vmem>>, vector<1x1x384xf32>
    %17 = vector.shape_cast %16 : vector<1x1x384xf32> to vector<1x384xf32>
    %18 = vector.broadcast %17 : vector<1x384xf32> to vector<24x384xf32>
    %19 = arith.addf %15, %18 : vector<24x384xf32>
    %c0_11 = arith.constant 0 : index
    %c0_12 = arith.constant 0 : index
    %20 = vector.load %arg5[%c0_11, %c0_12] : memref<24x24xf32, #tpu.memory_space<vmem>>, vector<24x24xf32>
    %21 = vector.extract_strided_slice %19 {offsets = [0, 0], sizes = [24, 8], strides = [1, 1]} : vector<24x384xf32> to vector<24x8xf32>
    %22 = arith.truncf %21 : vector<24x8xf32> to vector<24x8xbf16>
    %23 = vector.extract_strided_slice %19 {offsets = [0, 128], sizes = [24, 8], strides = [1, 1]} : vector<24x384xf32> to vector<24x8xf32>
    %24 = arith.truncf %23 : vector<24x8xf32> to vector<24x8xbf16>
    %25 = vector.extract_strided_slice %19 {offsets = [0, 256], sizes = [24, 8], strides = [1, 1]} : vector<24x384xf32> to vector<24x8xf32>
    %26 = arith.truncf %25 : vector<24x8xf32> to vector<24x8xbf16>
    %cst_13 = arith.constant dense<0.000000e+00> : vector<24x24xf32>
    %27 = tpu.matmul %22, %24, %cst_13 {dimension_numbers = #tpu.dot_dimension_numbers<[1], [1], [0], [0], [0, 0, 1, 0], [], []>} : vector<24x8xbf16>, vector<24x8xbf16>, vector<24x24xf32> -> vector<24x24xf32>
    %28 = arith.addf %27, %20 : vector<24x24xf32>
    %cst_14 = arith.constant dense<0xFF800000> : vector<24xf32>
    %29 = vector.multi_reduction <maximumf>, %28, %cst_14 [1] : vector<24x24xf32> to vector<24xf32>
    %30 = vector.shape_cast %29 : vector<24xf32> to vector<24x1xf32>
    %31 = vector.broadcast %30 : vector<24x1xf32> to vector<24x24xf32>
    %32 = arith.subf %28, %31 : vector<24x24xf32>
    %33 = math.exp %32 : vector<24x24xf32>
    %cst_15 = arith.constant dense<0.000000e+00> : vector<24xf32>
    %34 = vector.multi_reduction <add>, %33, %cst_15 [1] : vector<24x24xf32> to vector<24xf32>
    %35 = vector.shape_cast %34 : vector<24xf32> to vector<24x1xf32>
    %36 = tpu.reciprocal %35 {approx = true} : vector<24x1xf32> -> vector<24x1xf32>
    %37 = vector.broadcast %36 : vector<24x1xf32> to vector<24x24xf32>
    %38 = arith.mulf %33, %37 : vector<24x24xf32>
    %39 = arith.truncf %38 : vector<24x24xf32> to vector<24x24xbf16>
    %cst_16 = arith.constant dense<0.000000e+00> : vector<24x8xf32>
    %40 = tpu.matmul %39, %26, %cst_16 {dimension_numbers = #tpu.dot_dimension_numbers<[1], [0], [0], [1], [0, 0, 1, 1], [], []>} : vector<24x24xbf16>, vector<24x8xbf16>, vector<24x8xf32> -> vector<24x8xf32>
    %41 = vector.extract_strided_slice %19 {offsets = [0, 8], sizes = [24, 8], strides = [1, 1]} : vector<24x384xf32> to vector<24x8xf32>
    %42 = arith.truncf %41 : vector<24x8xf32> to vector<24x8xbf16>
    %43 = vector.extract_strided_slice %19 {offsets = [0, 136], sizes = [24, 8], strides = [1, 1]} : vector<24x384xf32> to vector<24x8xf32>
    %44 = arith.truncf %43 : vector<24x8xf32> to vector<24x8xbf16>
    %45 = vector.extract_strided_slice %19 {offsets = [0, 264], sizes = [24, 8], strides = [1, 1]} : vector<24x384xf32> to vector<24x8xf32>
    %46 = arith.truncf %45 : vector<24x8xf32> to vector<24x8xbf16>
    %cst_17 = arith.constant dense<0.000000e+00> : vector<24x24xf32>
    %47 = tpu.matmul %42, %44, %cst_17 {dimension_numbers = #tpu.dot_dimension_numbers<[1], [1], [0], [0], [0, 0, 1, 0], [], []>} : vector<24x8xbf16>, vector<24x8xbf16>, vector<24x24xf32> -> vector<24x24xf32>
    %48 = arith.addf %47, %20 : vector<24x24xf32>
    %cst_18 = arith.constant dense<0xFF800000> : vector<24xf32>
    %49 = vector.multi_reduction <maximumf>, %48, %cst_18 [1] : vector<24x24xf32> to vector<24xf32>
    %50 = vector.shape_cast %49 : vector<24xf32> to vector<24x1xf32>
    %51 = vector.broadcast %50 : vector<24x1xf32> to vector<24x24xf32>
    %52 = arith.subf %48, %51 : vector<24x24xf32>
    %53 = math.exp %52 : vector<24x24xf32>
    %cst_19 = arith.constant dense<0.000000e+00> : vector<24xf32>
    %54 = vector.multi_reduction <add>, %53, %cst_19 [1] : vector<24x24xf32> to vector<24xf32>
    %55 = vector.shape_cast %54 : vector<24xf32> to vector<24x1xf32>
    %56 = tpu.reciprocal %55 {approx = true} : vector<24x1xf32> -> vector<24x1xf32>
    %57 = vector.broadcast %56 : vector<24x1xf32> to vector<24x24xf32>
    %58 = arith.mulf %53, %57 : vector<24x24xf32>
    %59 = arith.truncf %58 : vector<24x24xf32> to vector<24x24xbf16>
    %cst_20 = arith.constant dense<0.000000e+00> : vector<24x8xf32>
    %60 = tpu.matmul %59, %46, %cst_20 {dimension_numbers = #tpu.dot_dimension_numbers<[1], [0], [0], [1], [0, 0, 1, 1], [], []>} : vector<24x24xbf16>, vector<24x8xbf16>, vector<24x8xf32> -> vector<24x8xf32>
    %61 = vector.extract_strided_slice %19 {offsets = [0, 16], sizes = [24, 8], strides = [1, 1]} : vector<24x384xf32> to vector<24x8xf32>
    %62 = arith.truncf %61 : vector<24x8xf32> to vector<24x8xbf16>
    %63 = vector.extract_strided_slice %19 {offsets = [0, 144], sizes = [24, 8], strides = [1, 1]} : vector<24x384xf32> to vector<24x8xf32>
    %64 = arith.truncf %63 : vector<24x8xf32> to vector<24x8xbf16>
    %65 = vector.extract_strided_slice %19 {offsets = [0, 272], sizes = [24, 8], strides = [1, 1]} : vector<24x384xf32> to vector<24x8xf32>
    %66 = arith.truncf %65 : vector<24x8xf32> to vector<24x8xbf16>
    %cst_21 = arith.constant dense<0.000000e+00> : vector<24x24xf32>
    %67 = tpu.matmul %62, %64, %cst_21 {dimension_numbers = #tpu.dot_dimension_numbers<[1], [1], [0], [0], [0, 0, 1, 0], [], []>} : vector<24x8xbf16>, vector<24x8xbf16>, vector<24x24xf32> -> vector<24x24xf32>
    %68 = arith.addf %67, %20 : vector<24x24xf32>
    %cst_22 = arith.constant dense<0xFF800000> : vector<24xf32>
    %69 = vector.multi_reduction <maximumf>, %68, %cst_22 [1] : vector<24x24xf32> to vector<24xf32>
    %70 = vector.shape_cast %69 : vector<24xf32> to vector<24x1xf32>
    %71 = vector.broadcast %70 : vector<24x1xf32> to vector<24x24xf32>
    %72 = arith.subf %68, %71 : vector<24x24xf32>
    %73 = math.exp %72 : vector<24x24xf32>
    %cst_23 = arith.constant dense<0.000000e+00> : vector<24xf32>
    %74 = vector.multi_reduction <add>, %73, %cst_23 [1] : vector<24x24xf32> to vector<24xf32>
    %75 = vector.shape_cast %74 : vector<24xf32> to vector<24x1xf32>
    %76 = tpu.reciprocal %75 {approx = true} : vector<24x1xf32> -> vector<24x1xf32>
    %77 = vector.broadcast %76 : vector<24x1xf32> to vector<24x24xf32>
    %78 = arith.mulf %73, %77 : vector<24x24xf32>
    %79 = arith.truncf %78 : vector<24x24xf32> to vector<24x24xbf16>
    %cst_24 = arith.constant dense<0.000000e+00> : vector<24x8xf32>
    %80 = tpu.matmul %79, %66, %cst_24 {dimension_numbers = #tpu.dot_dimension_numbers<[1], [0], [0], [1], [0, 0, 1, 1], [], []>} : vector<24x24xbf16>, vector<24x8xbf16>, vector<24x8xf32> -> vector<24x8xf32>
    %81 = vector.extract_strided_slice %19 {offsets = [0, 24], sizes = [24, 8], strides = [1, 1]} : vector<24x384xf32> to vector<24x8xf32>
    %82 = arith.truncf %81 : vector<24x8xf32> to vector<24x8xbf16>
    %83 = vector.extract_strided_slice %19 {offsets = [0, 152], sizes = [24, 8], strides = [1, 1]} : vector<24x384xf32> to vector<24x8xf32>
    %84 = arith.truncf %83 : vector<24x8xf32> to vector<24x8xbf16>
    %85 = vector.extract_strided_slice %19 {offsets = [0, 280], sizes = [24, 8], strides = [1, 1]} : vector<24x384xf32> to vector<24x8xf32>
    %86 = arith.truncf %85 : vector<24x8xf32> to vector<24x8xbf16>
    %cst_25 = arith.constant dense<0.000000e+00> : vector<24x24xf32>
    %87 = tpu.matmul %82, %84, %cst_25 {dimension_numbers = #tpu.dot_dimension_numbers<[1], [1], [0], [0], [0, 0, 1, 0], [], []>} : vector<24x8xbf16>, vector<24x8xbf16>, vector<24x24xf32> -> vector<24x24xf32>
    %88 = arith.addf %87, %20 : vector<24x24xf32>
    %cst_26 = arith.constant dense<0xFF800000> : vector<24xf32>
    %89 = vector.multi_reduction <maximumf>, %88, %cst_26 [1] : vector<24x24xf32> to vector<24xf32>
    %90 = vector.shape_cast %89 : vector<24xf32> to vector<24x1xf32>
    %91 = vector.broadcast %90 : vector<24x1xf32> to vector<24x24xf32>
    %92 = arith.subf %88, %91 : vector<24x24xf32>
    %93 = math.exp %92 : vector<24x24xf32>
    %cst_27 = arith.constant dense<0.000000e+00> : vector<24xf32>
    %94 = vector.multi_reduction <add>, %93, %cst_27 [1] : vector<24x24xf32> to vector<24xf32>
    %95 = vector.shape_cast %94 : vector<24xf32> to vector<24x1xf32>
    %96 = tpu.reciprocal %95 {approx = true} : vector<24x1xf32> -> vector<24x1xf32>
    %97 = vector.broadcast %96 : vector<24x1xf32> to vector<24x24xf32>
    %98 = arith.mulf %93, %97 : vector<24x24xf32>
    %99 = arith.truncf %98 : vector<24x24xf32> to vector<24x24xbf16>
    %cst_28 = arith.constant dense<0.000000e+00> : vector<24x8xf32>
    %100 = tpu.matmul %99, %86, %cst_28 {dimension_numbers = #tpu.dot_dimension_numbers<[1], [0], [0], [1], [0, 0, 1, 1], [], []>} : vector<24x24xbf16>, vector<24x8xbf16>, vector<24x8xf32> -> vector<24x8xf32>
    %101 = tpu.concatenate %40, %60, %80, %100 in 1 : vector<24x8xf32>, vector<24x8xf32>, vector<24x8xf32>, vector<24x8xf32> -> vector<24x32xf32>
    %c0_29 = arith.constant 0 : index
    %c0_30 = arith.constant 0 : index
    %c0_31 = arith.constant 0 : index
    %102 = vector.load %arg8[%c0_29, %c0_30, %c0_31] : memref<1x32x128xbf16, #tpu.memory_space<vmem>>, vector<1x32x128xbf16>
    %103 = vector.shape_cast %102 : vector<1x32x128xbf16> to vector<32x128xbf16>
    %104 = arith.truncf %101 : vector<24x32xf32> to vector<24x32xbf16>
    %cst_32 = arith.constant dense<0.000000e+00> : vector<24x128xf32>
    %105 = tpu.matmul %104, %103, %cst_32 {dimension_numbers = #tpu.dot_dimension_numbers<[1], [0], [0], [1], [0, 0, 1, 1], [], []>} : vector<24x32xbf16>, vector<32x128xbf16>, vector<24x128xf32> -> vector<24x128xf32>
    %106 = vector.broadcast %6 : vector<1x128xf32> to vector<24x128xf32>
    %107 = arith.addf %105, %106 : vector<24x128xf32>
    %108 = arith.addf %3, %107 : vector<24x128xf32>
    %cst_33 = arith.constant dense<0.000000e+00> : vector<24xf32>
    %109 = vector.multi_reduction <add>, %108, %cst_33 [1] : vector<24x128xf32> to vector<24xf32>
    %110 = vector.shape_cast %109 : vector<24xf32> to vector<24x1xf32>
    %cst_34 = arith.constant 3.125000e-02 : f32
    %111 = vector.broadcast %cst_34 : f32 to vector<24x1xf32>
    %112 = arith.mulf %110, %111 : vector<24x1xf32>
    %113 = arith.mulf %108, %108 : vector<24x128xf32>
    %cst_35 = arith.constant dense<0.000000e+00> : vector<24xf32>
    %114 = vector.multi_reduction <add>, %113, %cst_35 [1] : vector<24x128xf32> to vector<24xf32>
    %115 = vector.shape_cast %114 : vector<24xf32> to vector<24x1xf32>
    %cst_36 = arith.constant 3.125000e-02 : f32
    %116 = vector.broadcast %cst_36 : f32 to vector<24x1xf32>
    %117 = arith.mulf %115, %116 : vector<24x1xf32>
    %118 = arith.mulf %112, %112 : vector<24x1xf32>
    %119 = arith.subf %117, %118 : vector<24x1xf32>
    %120 = vector.broadcast %112 : vector<24x1xf32> to vector<24x128xf32>
    %121 = arith.subf %108, %120 : vector<24x128xf32>
    %cst_37 = arith.constant 9.99999974E-6 : f32
    %122 = vector.broadcast %cst_37 : f32 to vector<24x1xf32>
    %123 = arith.addf %119, %122 : vector<24x1xf32>
    %124 = math.rsqrt %123 : vector<24x1xf32>
    %125 = vector.broadcast %124 : vector<24x1xf32> to vector<24x128xf32>
    %126 = arith.mulf %121, %125 : vector<24x128xf32>
    %127 = vector.broadcast %7 : vector<1x128xf32> to vector<24x128xf32>
    %128 = arith.mulf %126, %127 : vector<24x128xf32>
    %129 = vector.broadcast %8 : vector<1x128xf32> to vector<24x128xf32>
    %130 = arith.addf %128, %129 : vector<24x128xf32>
    %c0_38 = arith.constant 0 : index
    %c0_39 = arith.constant 0 : index
    %c0_40 = arith.constant 0 : index
    %131 = vector.load %arg9[%c0_38, %c0_39, %c0_40] : memref<1x128x128xbf16, #tpu.memory_space<vmem>>, vector<1x128x128xbf16>
    %132 = vector.shape_cast %131 : vector<1x128x128xbf16> to vector<128x128xbf16>
    %133 = arith.truncf %130 : vector<24x128xf32> to vector<24x128xbf16>
    %cst_41 = arith.constant dense<0.000000e+00> : vector<24x128xf32>
    %134 = tpu.matmul %133, %132, %cst_41 {dimension_numbers = #tpu.dot_dimension_numbers<[1], [0], [0], [1], [0, 0, 1, 1], [], []>} : vector<24x128xbf16>, vector<128x128xbf16>, vector<24x128xf32> -> vector<24x128xf32>
    %c0_42 = arith.constant 0 : index
    %c0_43 = arith.constant 0 : index
    %c0_44 = arith.constant 0 : index
    %135 = vector.load %arg10[%c0_42, %c0_43, %c0_44] : memref<1x1x128xf32, #tpu.memory_space<vmem>>, vector<1x1x128xf32>
    %136 = vector.shape_cast %135 : vector<1x1x128xf32> to vector<1x128xf32>
    %137 = vector.broadcast %136 : vector<1x128xf32> to vector<24x128xf32>
    %138 = arith.addf %134, %137 : vector<24x128xf32>
    %cst_45 = arith.constant 0.000000e+00 : f32
    %139 = vector.broadcast %cst_45 : f32 to vector<24x128xf32>
    %140 = arith.maximumf %138, %139 : vector<24x128xf32>
    %c0_46 = arith.constant 0 : index
    %c0_47 = arith.constant 0 : index
    %c0_48 = arith.constant 0 : index
    %141 = vector.load %arg11[%c0_46, %c0_47, %c0_48] : memref<1x128x128xbf16, #tpu.memory_space<vmem>>, vector<1x128x128xbf16>
    %142 = vector.shape_cast %141 : vector<1x128x128xbf16> to vector<128x128xbf16>
    %143 = arith.truncf %140 : vector<24x128xf32> to vector<24x128xbf16>
    %cst_49 = arith.constant dense<0.000000e+00> : vector<24x128xf32>
    %144 = tpu.matmul %143, %142, %cst_49 {dimension_numbers = #tpu.dot_dimension_numbers<[1], [0], [0], [1], [0, 0, 1, 1], [], []>} : vector<24x128xbf16>, vector<128x128xbf16>, vector<24x128xf32> -> vector<24x128xf32>
    %145 = vector.broadcast %9 : vector<1x128xf32> to vector<24x128xf32>
    %146 = arith.addf %144, %145 : vector<24x128xf32>
    %147 = arith.addf %130, %146 : vector<24x128xf32>
    %cst_50 = arith.constant dense<0.000000e+00> : vector<24xf32>
    %148 = vector.multi_reduction <add>, %147, %cst_50 [1] : vector<24x128xf32> to vector<24xf32>
    %149 = vector.shape_cast %148 : vector<24xf32> to vector<24x1xf32>
    %cst_51 = arith.constant 3.125000e-02 : f32
    %150 = vector.broadcast %cst_51 : f32 to vector<24x1xf32>
    %151 = arith.mulf %149, %150 : vector<24x1xf32>
    %152 = arith.mulf %147, %147 : vector<24x128xf32>
    %cst_52 = arith.constant dense<0.000000e+00> : vector<24xf32>
    %153 = vector.multi_reduction <add>, %152, %cst_52 [1] : vector<24x128xf32> to vector<24xf32>
    %154 = vector.shape_cast %153 : vector<24xf32> to vector<24x1xf32>
    %cst_53 = arith.constant 3.125000e-02 : f32
    %155 = vector.broadcast %cst_53 : f32 to vector<24x1xf32>
    %156 = arith.mulf %154, %155 : vector<24x1xf32>
    %157 = arith.mulf %151, %151 : vector<24x1xf32>
    %158 = arith.subf %156, %157 : vector<24x1xf32>
    %159 = vector.broadcast %151 : vector<24x1xf32> to vector<24x128xf32>
    %160 = arith.subf %147, %159 : vector<24x128xf32>
    %cst_54 = arith.constant 9.99999974E-6 : f32
    %161 = vector.broadcast %cst_54 : f32 to vector<24x1xf32>
    %162 = arith.addf %158, %161 : vector<24x1xf32>
    %163 = math.rsqrt %162 : vector<24x1xf32>
    %164 = vector.broadcast %163 : vector<24x1xf32> to vector<24x128xf32>
    %165 = arith.mulf %160, %164 : vector<24x128xf32>
    %166 = vector.broadcast %10 : vector<1x128xf32> to vector<24x128xf32>
    %167 = arith.mulf %165, %166 : vector<24x128xf32>
    %168 = vector.broadcast %11 : vector<1x128xf32> to vector<24x128xf32>
    %169 = arith.addf %167, %168 : vector<24x128xf32>
    %c0_55 = arith.constant 0 : index
    %c0_56 = arith.constant 0 : index
    %170 = vector.load %arg16[%c0_55, %c0_56] : memref<24x128xf32, #tpu.memory_space<vmem>>, vector<24x128xf32>
    tpu.vector_store %arg16[%c0_55, %c0_56], %169 {strides = array<i32>} : memref<24x128xf32, #tpu.memory_space<vmem>>, vector<24x128xf32>,
    %c1_i32 = arith.constant 1 : i32
    %171 = arith.cmpi eq, %arg1, %c1_i32 : i32
    %172 = arith.extui %171 : i1 to i32
    %c0_i32_57 = arith.constant 0 : i32
    %173 = arith.cmpi ne, %172, %c0_i32_57 : i32
    scf.if %173 {
      %174 = vector.extract_strided_slice %169 {offsets = [0, 0], sizes = [8, 128], strides = [1, 1]} : vector<24x128xf32> to vector<8x128xf32>
      %175 = arith.truncf %174 : vector<8x128xf32> to vector<8x128xbf16>
      %c0_58 = arith.constant 0 : index
      %c0_59 = arith.constant 0 : index
      %176 = vector.load %arg13[%c0_58, %c0_59] : memref<128x128xbf16, #tpu.memory_space<vmem>>, vector<128x128xbf16>
      %cst_60 = arith.constant dense<0.000000e+00> : vector<8x128xf32>
      %177 = tpu.matmul %175, %176, %cst_60 {dimension_numbers = #tpu.dot_dimension_numbers<[1], [0], [0], [1], [0, 0, 1, 1], [], []>} : vector<8x128xbf16>, vector<128x128xbf16>, vector<8x128xf32> -> vector<8x128xf32>
      %c0_61 = arith.constant 0 : index
      %c0_62 = arith.constant 0 : index
      %178 = vector.load %arg14[%c0_61, %c0_62] : memref<1x128xf32, #tpu.memory_space<vmem>>, vector<1x128xf32>
      %179 = vector.broadcast %178 : vector<1x128xf32> to vector<8x128xf32>
      %180 = arith.addf %177, %179 : vector<8x128xf32>
      %c0_63 = arith.constant 0 : index
      %c0_64 = arith.constant 0 : index
      %181 = vector.load %arg15[%c0_63, %c0_64] : memref<8x128xf32, #tpu.memory_space<vmem>>, vector<8x128xf32>
      tpu.vector_store %arg15[%c0_63, %c0_64], %180 {strides = array<i32>} : memref<8x128xf32, #tpu.memory_space<vmem>>, vector<8x128xf32>,
    } else {
    }
    return
  }
  func.func @transform_0(%arg0: i32, %arg1: i32) -> (i32, i32) {
    %c0_i32 = arith.constant 0 : i32
    %c0_i32_0 = arith.constant 0 : i32
    return %arg0, %c0_i32 : i32, i32
  }
  func.func @transform_1(%arg0: i32, %arg1: i32) -> (i32, i32) {
    %c0_i32 = arith.constant 0 : i32
    %c0_i32_0 = arith.constant 0 : i32
    return %arg0, %c0_i32 : i32, i32
  }
  func.func @transform_2(%arg0: i32, %arg1: i32) -> (i32, i32) {
    %c0_i32 = arith.constant 0 : i32
    %c0_i32_0 = arith.constant 0 : i32
    %c0_i32_1 = arith.constant 0 : i32
    return %c0_i32, %c0_i32_0 : i32, i32
  }
  func.func @transform_3(%arg0: i32, %arg1: i32) -> (i32, i32) {
    %c0_i32 = arith.constant 0 : i32
    %c0_i32_0 = arith.constant 0 : i32
    %c0_i32_1 = arith.constant 0 : i32
    return %c0_i32, %c0_i32_0 : i32, i32
  }
  func.func @transform_4(%arg0: i32, %arg1: i32) -> (i32, i32, i32) {
    %c0_i32 = arith.constant 0 : i32
    %c0_i32_0 = arith.constant 0 : i32
    %c0_i32_1 = arith.constant 0 : i32
    return %arg1, %c0_i32, %c0_i32_0 : i32, i32, i32
  }
  func.func @transform_5(%arg0: i32, %arg1: i32) -> (i32, i32, i32) {
    %c0_i32 = arith.constant 0 : i32
    %c0_i32_0 = arith.constant 0 : i32
    %c0_i32_1 = arith.constant 0 : i32
    return %arg1, %c0_i32, %c0_i32_0 : i32, i32, i32
  }
  func.func @transform_6(%arg0: i32, %arg1: i32) -> (i32, i32, i32) {
    %c0_i32 = arith.constant 0 : i32
    %c0_i32_0 = arith.constant 0 : i32
    %c0_i32_1 = arith.constant 0 : i32
    return %arg1, %c0_i32, %c0_i32_0 : i32, i32, i32
  }
  func.func @transform_7(%arg0: i32, %arg1: i32) -> (i32, i32, i32) {
    %c0_i32 = arith.constant 0 : i32
    %c0_i32_0 = arith.constant 0 : i32
    %c0_i32_1 = arith.constant 0 : i32
    return %arg1, %c0_i32, %c0_i32_0 : i32, i32, i32
  }
  func.func @transform_8(%arg0: i32, %arg1: i32) -> (i32, i32, i32) {
    %c0_i32 = arith.constant 0 : i32
    %c0_i32_0 = arith.constant 0 : i32
    %c0_i32_1 = arith.constant 0 : i32
    return %arg1, %c0_i32, %c0_i32_0 : i32, i32, i32
  }
  func.func @transform_9(%arg0: i32, %arg1: i32) -> (i32, i32, i32) {
    %c0_i32 = arith.constant 0 : i32
    %c0_i32_0 = arith.constant 0 : i32
    %c0_i32_1 = arith.constant 0 : i32
    return %arg1, %c0_i32, %c0_i32_0 : i32, i32, i32
  }
  func.func @transform_10(%arg0: i32, %arg1: i32) -> (i32, i32, i32) {
    %c0_i32 = arith.constant 0 : i32
    %c0_i32_0 = arith.constant 0 : i32
    %c0_i32_1 = arith.constant 0 : i32
    return %arg1, %c0_i32, %c0_i32_0 : i32, i32, i32
  }
  func.func @transform_11(%arg0: i32, %arg1: i32) -> (i32, i32) {
    %c0_i32 = arith.constant 0 : i32
    %c0_i32_0 = arith.constant 0 : i32
    %c0_i32_1 = arith.constant 0 : i32
    return %c0_i32, %c0_i32_0 : i32, i32
  }
  func.func @transform_12(%arg0: i32, %arg1: i32) -> (i32, i32) {
    %c0_i32 = arith.constant 0 : i32
    %c0_i32_0 = arith.constant 0 : i32
    %c0_i32_1 = arith.constant 0 : i32
    return %c0_i32, %c0_i32_0 : i32, i32
  }
  func.func @transform_13(%arg0: i32, %arg1: i32) -> (i32, i32) {
    %c0_i32 = arith.constant 0 : i32
    %c0_i32_0 = arith.constant 0 : i32
    return %arg0, %c0_i32 : i32, i32
  }
}

</mosaic_0001>

<llo_original>
// kernel: vit_forward.1
$region0: #{vit_forward.1}
  #allocation0 [shape = 'u32[]', space=smem, size = 0x4, offset = 0x4, fixed_abs, tag = 'smem constant byte address 0x4 - core index']
  #allocation1 [shape = 'u32[144,128]{1,0:T(1,128)}', space=vmem, size = 0x12000, scoped, tag = 'internal scratch']
  #allocation2 [shape = 'f32[24,128]{1,0:T(8,128)}', space=vmem, size = 0x3000, scoped, tag = 'scratch operand']
  %s0 = inlined_call_operand.vmem [shape: f32[48,128], index: 0, kind: input, shape index: {}]
  %s1 = inlined_call_operand.vmem [shape: f32[48,128], index: 1, kind: input, shape index: {}]
  %s2 = inlined_call_operand.vmem [shape: bf16[128,128], index: 2, kind: input, shape index: {}]
  %s3 = inlined_call_operand.vmem [shape: f32[24,24], index: 3, kind: input, shape index: {}]
  %s4 = inlined_call_operand.vmem [shape: bf16[2,128,384], index: 4, kind: input, shape index: {}]
  %s5 = inlined_call_operand.vmem [shape: f32[2,1,384], index: 5, kind: input, shape index: {}]
  %s6 = inlined_call_operand.vmem [shape: bf16[2,32,128], index: 6, kind: input, shape index: {}]
  %s7 = inlined_call_operand.vmem [shape: bf16[2,128,128], index: 7, kind: input, shape index: {}]
  %s8 = inlined_call_operand.vmem [shape: f32[2,1,128], index: 8, kind: input, shape index: {}]
  %s9 = inlined_call_operand.vmem [shape: bf16[2,128,128], index: 9, kind: input, shape index: {}]
  %s10 = inlined_call_operand.vmem [shape: f32[2,8,128], index: 10, kind: input, shape index: {}]
  %s11 = inlined_call_operand.vmem [shape: bf16[128,128], index: 11, kind: input, shape index: {}]
  %s12 = inlined_call_operand.vmem [shape: f32[1,128], index: 12, kind: input, shape index: {}]
  %s13 = inlined_call_operand.vmem [shape: f32[16,128], index: 13, kind: output, shape index: {}]
  %s14 = sld [smem:[#allocation0]]
  $region93: #{vit_forward.1} parent=0
    _
  %s16 = ssub.s32 1, %s14
  %s17 = scalar_select 0, %s16, %s14
  loop: start=0, step=1, limit=6
  $region2: #{vit_forward.1} parent=0 // loop_pre_header
    _
  $region3: #{vit_forward.1} parent=0 // loop_header
    %s19 = sphi 0, %s23
    %p20 = scmp.ge.s32.totalorder %s19, 6
    %s26 = sphi 0, %s38
    %s27 = sphi 0, %s34
    %s28 = sphi 0, %s26
    %s29 = sphi 0, %s27
    %s30 = sphi 0, %s28
    %s31 = sphi 0, %s29
    %s41 = sphi 0, %s43
    %s44 = sphi 0, %s41
    %s45 = sphi 0, %s44
    %s61 = sphi 0, %s45
    %s67 = sphi 0, %s69
    %s70 = sphi 0, %s67
    %s71 = sphi 0, %s70
    %s87 = sphi 0, %s71
    %s91 = sphi 0, %s91
    %s93 = sphi 0, %s91
    %s94 = sphi 0, %s93
    %s108 = sphi 0, %s94
    %s112 = sphi 0, %s112
    %s114 = sphi 0, %s112
    %s115 = sphi 0, %s114
    %s129 = sphi 0, %s115
    %s135 = sphi 0, %s137
    %s138 = sphi 0, %s135
    %s139 = sphi 0, %s138
    %s155 = sphi 0, %s139
    %s161 = sphi 0, %s163
    %s164 = sphi 0, %s161
    %s165 = sphi 0, %s164
    %s181 = sphi 0, %s165
    %s187 = sphi 0, %s189
    %s190 = sphi 0, %s187
    %s191 = sphi 0, %s190
    %s207 = sphi 0, %s191
    %s213 = sphi 0, %s215
    %s216 = sphi 0, %s213
    %s217 = sphi 0, %s216
    %s233 = sphi 0, %s217
    %s239 = sphi 0, %s241
    %s242 = sphi 0, %s239
    %s243 = sphi 0, %s242
    %s259 = sphi 0, %s243
    %s265 = sphi 0, %s267
    %s268 = sphi 0, %s265
    %s269 = sphi 0, %s268
    %s285 = sphi 0, %s269
    %s291 = sphi 0, %s293
    %s294 = sphi 0, %s291
    %s295 = sphi 0, %s294
    %s311 = sphi 0, %s295
    %s315 = sphi 0, %s315
    %s317 = sphi 0, %s315
    %s318 = sphi 0, %s317
    %s332 = sphi 0, %s318
    %s336 = sphi 0, %s336
    %s338 = sphi 0, %s336
    %s339 = sphi 0, %s338
    %s353 = sphi 0, %s339
    %s359 = sphi 0, %s361
    %s362 = sphi 0, %s359
    %s363 = sphi 0, %s362
    %s379 = sphi 0, %s363
  $region4: #{vit_forward.1} parent=0 // loop_header_branch
    %22 = sbr.rel (%p20) target = $region8
  $region5: #{vit_forward.1} parent=0 // loop_body
    %s24 = ssub.s32 %s19, 1
    %s25 = ssub.s32 %s19, 2
    %s32 = sadd.s32 1, %s27
    %p33 = scmp.ge.s32.totalorder %s32, 2
    %s34 = scalar_select %p33, 0, %s32
    %s35 = sadd.s32 1, %s26
    %s36 = scalar_select %p33, %s35, %s26
    %p37 = scmp.ge.s32.totalorder %s36, 2
    %s38 = scalar_select %p37, 0, %s36
    %s39 = ssub.s32 %s26, %s38
    %p40 = scmp.eq.s32.totalorder %s39, 0
    %s42 = sadd.s32 %s41, 1
    %s43 = scalar_select %p40, %s41, %s42
    %p46 = pneg %p40
    %p47 = scmp.eq.s32.totalorder %s19, 3
    %p48 = por %p46, %p47
    %p49 = scmp.ne.s32.totalorder %s41, %s44
    %p50 = scmp.eq.s32.totalorder %s19, 0
    %p51 = por %p49, %p50
    %p52 = scmp.ne.s32.totalorder %s41, %s44
    %p53 = scmp.eq.s32.totalorder %s24, 3
    %p54 = por %p52, %p53
    %p55 = scmp.ne.s32.totalorder %s44, %s45
    %p56 = scmp.eq.s32.totalorder %s24, 0
    %p57 = por %p55, %p56
    %p58 = scmp.ne.s32.totalorder %s44, %s45
    %p59 = scmp.eq.s32.totalorder %s25, 3
    %p60 = por %p58, %p59
    %p62 = scmp.ne.s32.totalorder %s45, %s61
    %p63 = scmp.eq.s32.totalorder %s25, 0
    %p64 = por %p62, %p63
    %s65 = ssub.s32 %s26, %s38
    %p66 = scmp.eq.s32.totalorder %s65, 0
    %s68 = sadd.s32 %s67, 1
    %s69 = scalar_select %p66, %s67, %s68
    %p72 = pneg %p66
    %p73 = scmp.eq.s32.totalorder %s19, 3
    %p74 = por %p72, %p73
    %p75 = scmp.ne.s32.totalorder %s67, %s70
    %p76 = scmp.eq.s32.totalorder %s19, 0
    %p77 = por %p75, %p76
    %p78 = scmp.ne.s32.totalorder %s67, %s70
    %p79 = scmp.eq.s32.totalorder %s24, 3
    %p80 = por %p78, %p79
    %p81 = scmp.ne.s32.totalorder %s70, %s71
    %p82 = scmp.eq.s32.totalorder %s24, 0
    %p83 = por %p81, %p82
    %p84 = scmp.ne.s32.totalorder %s70, %s71
    %p85 = scmp.eq.s32.totalorder %s25, 3
    %p86 = por %p84, %p85
    %p88 = scmp.ne.s32.totalorder %s71, %s87
    %p89 = scmp.eq.s32.totalorder %s25, 0
    %p90 = por %p88, %p89
    %s92 = sadd.s32 %s91, 1
    %p95 = scmp.eq.s32.totalorder %s19, 3
    %p96 = scmp.ne.s32.totalorder %s91, %s93
    %p97 = scmp.eq.s32.totalorder %s19, 0
    %p98 = por %p96, %p97
    %p99 = scmp.ne.s32.totalorder %s91, %s93
    %p100 = scmp.eq.s32.totalorder %s24, 3
    %p101 = por %p99, %p100
    %p102 = scmp.ne.s32.totalorder %s93, %s94
    %p103 = scmp.eq.s32.totalorder %s24, 0
    %p104 = por %p102, %p103
    %p105 = scmp.ne.s32.totalorder %s93, %s94
    %p106 = scmp.eq.s32.totalorder %s25, 3
    %p107 = por %p105, %p106
    %p109 = scmp.ne.s32.totalorder %s94, %s108
    %p110 = scmp.eq.s32.totalorder %s25, 0
    %p111 = por %p109, %p110
    %s113 = sadd.s32 %s112, 1
    %p116 = scmp.eq.s32.totalorder %s19, 3
    %p117 = scmp.ne.s32.totalorder %s112, %s114
    %p118 = scmp.eq.s32.totalorder %s19, 0
    %p119 = por %p117, %p118
    %p120 = scmp.ne.s32.totalorder %s112, %s114
    %p121 = scmp.eq.s32.totalorder %s24, 3
    %p122 = por %p120, %p121
    %p123 = scmp.ne.s32.totalorder %s114, %s115
    %p124 = scmp.eq.s32.totalorder %s24, 0
    %p125 = por %p123, %p124
    %p126 = scmp.ne.s32.totalorder %s114, %s115
    %p127 = scmp.eq.s32.totalorder %s25, 3
    %p128 = por %p126, %p127
    %p130 = scmp.ne.s32.totalorder %s115, %s129
    %p131 = scmp.eq.s32.totalorder %s25, 0
    %p132 = por %p130, %p131
    %s133 = ssub.s32 %s27, %s34
    %p134 = scmp.eq.s32.totalorder %s133, 0
    %s136 = sadd.s32 %s135, 1
    %s137 = scalar_select %p134, %s135, %s136
    %p140 = pneg %p134
    %p141 = scmp.eq.s32.totalorder %s19, 3
    %p142 = por %p140, %p141
    %p143 = scmp.ne.s32.totalorder %s135, %s138
    %p144 = scmp.eq.s32.totalorder %s19, 0
    %p145 = por %p143, %p144
    %p146 = scmp.ne.s32.totalorder %s135, %s138
    %p147 = scmp.eq.s32.totalorder %s24, 3
    %p148 = por %p146, %p147
    %p149 = scmp.ne.s32.totalorder %s138, %s139
    %p150 = scmp.eq.s32.totalorder %s24, 0
    %p151 = por %p149, %p150
    %p152 = scmp.ne.s32.totalorder %s138, %s139
    %p153 = scmp.eq.s32.totalorder %s25, 3
    %p154 = por %p152, %p153
    %p156 = scmp.ne.s32.totalorder %s139, %s155
    %p157 = scmp.eq.s32.totalorder %s25, 0
    %p158 = por %p156, %p157
    %s159 = ssub.s32 %s27, %s34
    %p160 = scmp.eq.s32.totalorder %s159, 0
    %s162 = sadd.s32 %s161, 1
    %s163 = scalar_select %p160, %s161, %s162
    %p166 = pneg %p160
    %p167 = scmp.eq.s32.totalorder %s19, 3
    %p168 = por %p166, %p167
    %p169 = scmp.ne.s32.totalorder %s161, %s164
    %p170 = scmp.eq.s32.totalorder %s19, 0
    %p171 = por %p169, %p170
    %p172 = scmp.ne.s32.totalorder %s161, %s164
    %p173 = scmp.eq.s32.totalorder %s24, 3
    %p174 = por %p172, %p173
    %p175 = scmp.ne.s32.totalorder %s164, %s165
    %p176 = scmp.eq.s32.totalorder %s24, 0
    %p177 = por %p175, %p176
    %p178 = scmp.ne.s32.totalorder %s164, %s165
    %p179 = scmp.eq.s32.totalorder %s25, 3
    %p180 = por %p178, %p179
    %p182 = scmp.ne.s32.totalorder %s165, %s181
    %p183 = scmp.eq.s32.totalorder %s25, 0
    %p184 = por %p182, %p183
    %s185 = ssub.s32 %s27, %s34
    %p186 = scmp.eq.s32.totalorder %s185, 0
    %s188 = sadd.s32 %s187, 1
    %s189 = scalar_select %p186, %s187, %s188
    %p192 = pneg %p186
    %p193 = scmp.eq.s32.totalorder %s19, 3
    %p194 = por %p192, %p193
    %p195 = scmp.ne.s32.totalorder %s187, %s190
    %p196 = scmp.eq.s32.totalorder %s19, 0
    %p197 = por %p195, %p196
    %p198 = scmp.ne.s32.totalorder %s187, %s190
    %p199 = scmp.eq.s32.totalorder %s24, 3
    %p200 = por %p198, %p199
    %p201 = scmp.ne.s32.totalorder %s190, %s191
    %p202 = scmp.eq.s32.totalorder %s24, 0
    %p203 = por %p201, %p202
    %p204 = scmp.ne.s32.totalorder %s190, %s191
    %p205 = scmp.eq.s32.totalorder %s25, 3
    %p206 = por %p204, %p205
    %p208 = scmp.ne.s32.totalorder %s191, %s207
    %p209 = scmp.eq.s32.totalorder %s25, 0
    %p210 = por %p208, %p209
    %s211 = ssub.s32 %s27, %s34
    %p212 = scmp.eq.s32.totalorder %s211, 0
    %s214 = sadd.s32 %s213, 1
    %s215 = scalar_select %p212, %s213, %s214
    %p218 = pneg %p212
    %p219 = scmp.eq.s32.totalorder %s19, 3
    %p220 = por %p218, %p219
    %p221 = scmp.ne.s32.totalorder %s213, %s216
    %p222 = scmp.eq.s32.totalorder %s19, 0
    %p223 = por %p221, %p222
    %p224 = scmp.ne.s32.totalorder %s213, %s216
    %p225 = scmp.eq.s32.totalorder %s24, 3
    %p226 = por %p224, %p225
    %p227 = scmp.ne.s32.totalorder %s216, %s217
    %p228 = scmp.eq.s32.totalorder %s24, 0
    %p229 = por %p227, %p228
    %p230 = scmp.ne.s32.totalorder %s216, %s217
    %p231 = scmp.eq.s32.totalorder %s25, 3
    %p232 = por %p230, %p231
    %p234 = scmp.ne.s32.totalorder %s217, %s233
    %p235 = scmp.eq.s32.totalorder %s25, 0
    %p236 = por %p234, %p235
    %s237 = ssub.s32 %s27, %s34
    %p238 = scmp.eq.s32.totalorder %s237, 0
    %s240 = sadd.s32 %s239, 1
    %s241 = scalar_select %p238, %s239, %s240
    %p244 = pneg %p238
    %p245 = scmp.eq.s32.totalorder %s19, 3
    %p246 = por %p244, %p245
    %p247 = scmp.ne.s32.totalorder %s239, %s242
    %p248 = scmp.eq.s32.totalorder %s19, 0
    %p249 = por %p247, %p248
    %p250 = scmp.ne.s32.totalorder %s239, %s242
    %p251 = scmp.eq.s32.totalorder %s24, 3
    %p252 = por %p250, %p251
    %p253 = scmp.ne.s32.totalorder %s242, %s243
    %p254 = scmp.eq.s32.totalorder %s24, 0
    %p255 = por %p253, %p254
    %p256 = scmp.ne.s32.totalorder %s242, %s243
    %p257 = scmp.eq.s32.totalorder %s25, 3
    %p258 = por %p256, %p257
    %p260 = scmp.ne.s32.totalorder %s243, %s259
    %p261 = scmp.eq.s32.totalorder %s25, 0
    %p262 = por %p260, %p261
    %s263 = ssub.s32 %s27, %s34
    %p264 = scmp.eq.s32.totalorder %s263, 0
    %s266 = sadd.s32 %s265, 1
    %s267 = scalar_select %p264, %s265, %s266
    %p270 = pneg %p264
    %p271 = scmp.eq.s32.totalorder %s19, 3
    %p272 = por %p270, %p271
    %p273 = scmp.ne.s32.totalorder %s265, %s268
    %p274 = scmp.eq.s32.totalorder %s19, 0
    %p275 = por %p273, %p274
    %p276 = scmp.ne.s32.totalorder %s265, %s268
    %p277 = scmp.eq.s32.totalorder %s24, 3
    %p278 = por %p276, %p277
    %p279 = scmp.ne.s32.totalorder %s268, %s269
    %p280 = scmp.eq.s32.totalorder %s24, 0
    %p281 = por %p279, %p280
    %p282 = scmp.ne.s32.totalorder %s268, %s269
    %p283 = scmp.eq.s32.totalorder %s25, 3
    %p284 = por %p282, %p283
    %p286 = scmp.ne.s32.totalorder %s269, %s285
    %p287 = scmp.eq.s32.totalorder %s25, 0
    %p288 = por %p286, %p287
    %s289 = ssub.s32 %s27, %s34
    %p290 = scmp.eq.s32.totalorder %s289, 0
    %s292 = sadd.s32 %s291, 1
    %s293 = scalar_select %p290, %s291, %s292
    %p296 = pneg %p290
    %p297 = scmp.eq.s32.totalorder %s19, 3
    %p298 = por %p296, %p297
    %p299 = scmp.ne.s32.totalorder %s291, %s294
    %p300 = scmp.eq.s32.totalorder %s19, 0
    %p301 = por %p299, %p300
    %p302 = scmp.ne.s32.totalorder %s291, %s294
    %p303 = scmp.eq.s32.totalorder %s24, 3
    %p304 = por %p302, %p303
    %p305 = scmp.ne.s32.totalorder %s294, %s295
    %p306 = scmp.eq.s32.totalorder %s24, 0
    %p307 = por %p305, %p306
    %p308 = scmp.ne.s32.totalorder %s294, %s295
    %p309 = scmp.eq.s32.totalorder %s25, 3
    %p310 = por %p308, %p309
    %p312 = scmp.ne.s32.totalorder %s295, %s311
    %p313 = scmp.eq.s32.totalorder %s25, 0
    %p314 = por %p312, %p313
    %s316 = sadd.s32 %s315, 1
    %p319 = scmp.eq.s32.totalorder %s19, 3
    %p320 = scmp.ne.s32.totalorder %s315, %s317
    %p321 = scmp.eq.s32.totalorder %s19, 0
    %p322 = por %p320, %p321
    %p323 = scmp.ne.s32.totalorder %s315, %s317
    %p324 = scmp.eq.s32.totalorder %s24, 3
    %p325 = por %p323, %p324
    %p326 = scmp.ne.s32.totalorder %s317, %s318
    %p327 = scmp.eq.s32.totalorder %s24, 0
    %p328 = por %p326, %p327
    %p329 = scmp.ne.s32.totalorder %s317, %s318
    %p330 = scmp.eq.s32.totalorder %s25, 3
    %p331 = por %p329, %p330
    %p333 = scmp.ne.s32.totalorder %s318, %s332
    %p334 = scmp.eq.s32.totalorder %s25, 0
    %p335 = por %p333, %p334
    %s337 = sadd.s32 %s336, 1
    %p340 = scmp.eq.s32.totalorder %s19, 3
    %p341 = scmp.ne.s32.totalorder %s336, %s338
    %p342 = scmp.eq.s32.totalorder %s19, 0
    %p343 = por %p341, %p342
    %p344 = scmp.ne.s32.totalorder %s336, %s338
    %p345 = scmp.eq.s32.totalorder %s24, 3
    %p346 = por %p344, %p345
    %p347 = scmp.ne.s32.totalorder %s338, %s339
    %p348 = scmp.eq.s32.totalorder %s24, 0
    %p349 = por %p347, %p348
    %p350 = scmp.ne.s32.totalorder %s338, %s339
    %p351 = scmp.eq.s32.totalorder %s25, 3
    %p352 = por %p350, %p351
    %p354 = scmp.ne.s32.totalorder %s339, %s353
    %p355 = scmp.eq.s32.totalorder %s25, 0
    %p356 = por %p354, %p355
    %s357 = ssub.s32 %s26, %s38
    %p358 = scmp.eq.s32.totalorder %s357, 0
    %s360 = sadd.s32 %s359, 1
    %s361 = scalar_select %p358, %s359, %s360
    %p364 = pneg %p358
    %p365 = scmp.eq.s32.totalorder %s19, 3
    %p366 = por %p364, %p365
    %p367 = scmp.ne.s32.totalorder %s359, %s362
    %p368 = scmp.eq.s32.totalorder %s19, 0
    %p369 = por %p367, %p368
    %p370 = scmp.ne.s32.totalorder %s359, %s362
    %p371 = scmp.eq.s32.totalorder %s24, 3
    %p372 = por %p370, %p371
    %p373 = scmp.ne.s32.totalorder %s362, %s363
    %p374 = scmp.eq.s32.totalorder %s24, 0
    %p375 = por %p373, %p374
    %p376 = scmp.ne.s32.totalorder %s362, %s363
    %p377 = scmp.eq.s32.totalorder %s25, 3
    %p378 = por %p376, %p377
    %p380 = scmp.ne.s32.totalorder %s363, %s379
    %p381 = scmp.eq.s32.totalorder %s25, 0
    %p382 = por %p380, %p381
    %p383 = scmp.le.s32.totalorder 1, %s19
    %p384 = scmp.lt.s32.totalorder %s19, 5
    %p385 = pnand %p383, %p384
    %p386 = pneg %p385
    // Predicated region
    $region9: #{vit_forward.1} parent=5 // pred_check
      _
    $region10: #{vit_forward.1} parent=5 // pred_check_branch
      %388 = sbr.rel (%p385) target = $region12
    $region11: #{vit_forward.1} parent=5 // pred_region
      %s389 = ssub.s32 %s19, 1
      // Predicated region
      $region13: #{vit_forward.1} parent=11 // pred_check
        %p390 = pneg %p104
      $region14: #{vit_forward.1} parent=11 // pred_check_branch
        %392 = sbr.rel (%p390) target = $region16
      $region15: #{vit_forward.1} parent=11 // pred_region
        _
      $region16: #{vit_forward.1} parent=11 // pred_fallthru
        _
      // Predicated region
      $region17: #{vit_forward.1} parent=11 // pred_check
        %p393 = pneg %p125
      $region18: #{vit_forward.1} parent=11 // pred_check_branch
        %395 = sbr.rel (%p393) target = $region20
      $region19: #{vit_forward.1} parent=11 // pred_region
        _
      $region20: #{vit_forward.1} parent=11 // pred_fallthru
        _
      // Predicated region
      $region21: #{vit_forward.1} parent=11 // pred_check
        %p396 = pneg %p328
      $region22: #{vit_forward.1} parent=11 // pred_check_branch
        %398 = sbr.rel (%p396) target = $region24
      $region23: #{vit_forward.1} parent=11 // pred_region
        _
      $region24: #{vit_forward.1} parent=11 // pred_fallthru
        _
      // Predicated region
      $region25: #{vit_forward.1} parent=11 // pred_check
        %p399 = pneg %p349
      $region26: #{vit_forward.1} parent=11 // pred_check_branch
        %401 = sbr.rel (%p399) target = $region28
      $region27: #{vit_forward.1} parent=11 // pred_region
        _
      $region28: #{vit_forward.1} parent=11 // pred_fallthru
        _
    $region12: #{vit_forward.1} parent=5 // pred_fallthru
      _
    %p402 = scmp.lt.s32.totalorder %s19, 4
    // Predicated region
    $region29: #{vit_forward.1} parent=5 // pred_check
      %p403 = pneg %p402
    $region30: #{vit_forward.1} parent=5 // pred_check_branch
      %405 = sbr.rel (%p403) target = $region32
    $region31: #{vit_forward.1} parent=5 // pred_region
      // Predicated region
      $region33: #{vit_forward.1} parent=31 // pred_check
        %p406 = pneg %p51
      $region34: #{vit_forward.1} parent=31 // pred_check_branch
        %408 = sbr.rel (%p406) target = $region36
      $region35: #{vit_forward.1} parent=31 // pred_region
        %s409 = smul.u32 3, %s26
        %p410 = scmp.lt.s32.totalorder %s409, 5
        %s411 = scalar_select %p410, %s409, 5
        %s412 = smul.addr %s411, 8
        %s413 = scalar_lea.vmem %s0, %s412
        %s414 = smul.u32 3, %s26
      $region36: #{vit_forward.1} parent=31 // pred_fallthru
        _
      // Predicated region
      $region37: #{vit_forward.1} parent=31 // pred_check
        %p415 = pneg %p77
      $region38: #{vit_forward.1} parent=31 // pred_check_branch
        %417 = sbr.rel (%p415) target = $region40
      $region39: #{vit_forward.1} parent=31 // pred_region
        %s418 = smul.u32 3, %s26
        %p419 = scmp.lt.s32.totalorder %s418, 5
        %s420 = scalar_select %p419, %s418, 5
        %s421 = smul.addr %s420, 8
        %s422 = scalar_lea.vmem %s1, %s421
        %s423 = smul.u32 3, %s26
      $region40: #{vit_forward.1} parent=31 // pred_fallthru
        _
      // Predicated region
      $region41: #{vit_forward.1} parent=31 // pred_check
        %p424 = pneg %p145
      $region42: #{vit_forward.1} parent=31 // pred_check_branch
        %426 = sbr.rel (%p424) target = $region44
      $region43: #{vit_forward.1} parent=31 // pred_region
        %p427 = scmp.lt.s32.totalorder %s27, 1
        %s428 = scalar_select %p427, %s27, 1
        %s429 = smul.addr %s428, 48
        %s430 = smul.addr %s429, 4
        %s431 = scalar_lea.vmem %s4, %s430
      $region44: #{vit_forward.1} parent=31 // pred_fallthru
        _
      // Predicated region
      $region45: #{vit_forward.1} parent=31 // pred_check
        %p432 = pneg %p171
      $region46: #{vit_forward.1} parent=31 // pred_check_branch
        %434 = sbr.rel (%p432) target = $region48
      $region47: #{vit_forward.1} parent=31 // pred_region
        %p435 = scmp.lt.s32.totalorder %s27, 1
        %s436 = scalar_select %p435, %s27, 1
        %s437 = smul.addr %s436, 3
        %s438 = scalar_lea.vmem %s5, %s437
      $region48: #{vit_forward.1} parent=31 // pred_fallthru
        _
      // Predicated region
      $region49: #{vit_forward.1} parent=31 // pred_check
        %p439 = pneg %p197
      $region50: #{vit_forward.1} parent=31 // pred_check_branch
        %441 = sbr.rel (%p439) target = $region52
      $region51: #{vit_forward.1} parent=31 // pred_region
        %p442 = scmp.lt.s32.totalorder %s27, 1
        %s443 = scalar_select %p442, %s27, 1
        %s444 = smul.addr %s443, 4
        %s445 = smul.addr %s444, 4
        %s446 = scalar_lea.vmem %s6, %s445
      $region52: #{vit_forward.1} parent=31 // pred_fallthru
        _
      // Predicated region
      $region53: #{vit_forward.1} parent=31 // pred_check
        %p447 = pneg %p223
      $region54: #{vit_forward.1} parent=31 // pred_check_branch
        %449 = sbr.rel (%p447) target = $region56
      $region55: #{vit_forward.1} parent=31 // pred_region
        %p450 = scmp.lt.s32.totalorder %s27, 1
        %s451 = scalar_select %p450, %s27, 1
        %s452 = smul.addr %s451, 16
        %s453 = smul.addr %s452, 4
        %s454 = scalar_lea.vmem %s7, %s453
      $region56: #{vit_forward.1} parent=31 // pred_fallthru
        _
      // Predicated region
      $region57: #{vit_forward.1} parent=31 // pred_check
        %p455 = pneg %p249
      $region58: #{vit_forward.1} parent=31 // pred_check_branch
        %457 = sbr.rel (%p455) target = $region60
      $region59: #{vit_forward.1} parent=31 // pred_region
        %p458 = scmp.lt.s32.totalorder %s27, 1
        %s459 = scalar_select %p458, %s27, 1
        %s460 = scalar_lea.vmem %s8, %s459
      $region60: #{vit_forward.1} parent=31 // pred_fallthru
        _
      // Predicated region
      $region61: #{vit_forward.1} parent=31 // pred_check
        %p461 = pneg %p275
      $region62: #{vit_forward.1} parent=31 // pred_check_branch
        %463 = sbr.rel (%p461) target = $region64
      $region63: #{vit_forward.1} parent=31 // pred_region
        %p464 = scmp.lt.s32.totalorder %s27, 1
        %s465 = scalar_select %p464, %s27, 1
        %s466 = smul.addr %s465, 16
        %s467 = smul.addr %s466, 4
        %s468 = scalar_lea.vmem %s9, %s467
      $region64: #{vit_forward.1} parent=31 // pred_fallthru
        _
      // Predicated region
      $region65: #{vit_forward.1} parent=31 // pred_check
        %p469 = pneg %p301
      $region66: #{vit_forward.1} parent=31 // pred_check_branch
        %471 = sbr.rel (%p469) target = $region68
      $region67: #{vit_forward.1} parent=31 // pred_region
        %p472 = scmp.lt.s32.totalorder %s27, 1
        %s473 = scalar_select %p472, %s27, 1
        %s474 = smul.addr %s473, 8
        %s475 = scalar_lea.vmem %s10, %s474
      $region68: #{vit_forward.1} parent=31 // pred_fallthru
        _
    $region32: #{vit_forward.1} parent=5 // pred_fallthru
      _
    %p476 = scmp.le.s32.totalorder 1, %s19
    %p477 = scmp.lt.s32.totalorder %s19, 5
    %p478 = pnand %p476, %p477
    %p479 = pneg %p478
    // Predicated region
    $region69: #{vit_forward.1} parent=5 // pred_check
      _
    $region70: #{vit_forward.1} parent=5 // pred_check_branch
      %481 = sbr.rel (%p478) target = $region72
    $region71: #{vit_forward.1} parent=5 // pred_region
      %s482 = ssub.s32 %s19, 1
      %s483 = smul.u32 3, %s28
      %p484 = scmp.lt.s32.totalorder %s483, 5
      %s485 = scalar_select %p484, %s483, 5
      %s486 = smul.addr %s485, 8
      %s487 = scalar_lea.vmem %s0, %s486
      %p488 = pneg %p57
      %p489 = pneg %p54
      %s490 = smul.u32 3, %s28
      %p491 = scmp.lt.s32.totalorder %s490, 5
      %s492 = scalar_select %p491, %s490, 5
      %s493 = smul.addr %s492, 8
      %s494 = scalar_lea.vmem %s1, %s493
      %p495 = pneg %p83
      %p496 = pneg %p80
      %p497 = pneg %p104
      %p498 = pneg %p101
      %p499 = pneg %p125
      %p500 = pneg %p122
      %p501 = scmp.lt.s32.totalorder %s29, 1
      %s502 = scalar_select %p501, %s29, 1
      %s503 = smul.addr %s502, 48
      %s504 = smul.addr %s503, 4
      %s505 = scalar_lea.vmem %s4, %s504
      %p506 = pneg %p151
      %p507 = pneg %p148
      %p508 = scmp.lt.s32.totalorder %s29, 1
      %s509 = scalar_select %p508, %s29, 1
      %s510 = smul.addr %s509, 3
      %s511 = scalar_lea.vmem %s5, %s510
      %p512 = pneg %p177
      %p513 = pneg %p174
      %p514 = scmp.lt.s32.totalorder %s29, 1
      %s515 = scalar_select %p514, %s29, 1
      %s516 = smul.addr %s515, 4
      %s517 = smul.addr %s516, 4
      %s518 = scalar_lea.vmem %s6, %s517
      %p519 = pneg %p203
      %p520 = pneg %p200
      %p521 = scmp.lt.s32.totalorder %s29, 1
      %s522 = scalar_select %p521, %s29, 1
      %s523 = smul.addr %s522, 16
      %s524 = smul.addr %s523, 4
      %s525 = scalar_lea.vmem %s7, %s524
      %p526 = pneg %p229
      %p527 = pneg %p226
      %p528 = scmp.lt.s32.totalorder %s29, 1
      %s529 = scalar_select %p528, %s29, 1
      %s530 = scalar_lea.vmem %s8, %s529
      %p531 = pneg %p255
      %p532 = pneg %p252
      %p533 = scmp.lt.s32.totalorder %s29, 1
      %s534 = scalar_select %p533, %s29, 1
      %s535 = smul.addr %s534, 16
      %s536 = smul.addr %s535, 4
      %s537 = scalar_lea.vmem %s9, %s536
      %p538 = pneg %p281
      %p539 = pneg %p278
      %p540 = scmp.lt.s32.totalorder %s29, 1
      %s541 = scalar_select %p540, %s29, 1
      %s542 = smul.addr %s541, 8
      %s543 = scalar_lea.vmem %s10, %s542
      %p544 = pneg %p307
      %p545 = pneg %p304
      %p546 = pneg %p328
      %p547 = pneg %p325
      %p548 = pneg %p349
      %p549 = pneg %p346
      %p550 = pneg %p375
      %p551 = pneg %p372
      %p552 = scmp.lt.s32.totalorder %s28, 1
      %s553 = scalar_select %p552, %s28, 1
      %s554 = smul.addr %s553, 8
      %s555 = scalar_lea.vmem %s13, %s554
      %s556 = smul.u32 3, %s28
      %p557 = scmp.lt.s32.totalorder %s556, 5
      %s558 = scalar_select %p557, %s556, 5
      %s559 = smul.addr %s558, 8
      %s560 = scalar_lea.vmem %s0, %s559
      %s561 = smul.u32 3, %s28
      %s562 = smul.u32 3, %s28
      %p563 = scmp.lt.s32.totalorder %s562, 5
      %s564 = scalar_select %p563, %s562, 5
      %s565 = smul.addr %s564, 8
      %s566 = scalar_lea.vmem %s1, %s565
      %s567 = smul.u32 3, %s28
      %p568 = scmp.lt.s32.totalorder %s29, 1
      %s569 = scalar_select %p568, %s29, 1
      %s570 = smul.addr %s569, 48
      %s571 = smul.addr %s570, 4
      %s572 = scalar_lea.vmem %s4, %s571
      %p573 = scmp.lt.s32.totalorder %s29, 1
      %s574 = scalar_select %p573, %s29, 1
      %s575 = smul.addr %s574, 3
      %s576 = scalar_lea.vmem %s5, %s575
      %p577 = scmp.lt.s32.totalorder %s29, 1
      %s578 = scalar_select %p577, %s29, 1
      %s579 = smul.addr %s578, 4
      %s580 = smul.addr %s579, 4
      %s581 = scalar_lea.vmem %s6, %s580
      %p582 = scmp.lt.s32.totalorder %s29, 1
      %s583 = scalar_select %p582, %s29, 1
      %s584 = smul.addr %s583, 16
      %s585 = smul.addr %s584, 4
      %s586 = scalar_lea.vmem %s7, %s585
      %p587 = scmp.lt.s32.totalorder %s29, 1
      %s588 = scalar_select %p587, %s29, 1
      %s589 = scalar_lea.vmem %s8, %s588
      %p590 = scmp.lt.s32.totalorder %s29, 1
      %s591 = scalar_select %p590, %s29, 1
      %s592 = smul.addr %s591, 16
      %s593 = smul.addr %s592, 4
      %s594 = scalar_lea.vmem %s9, %s593
      %p595 = scmp.lt.s32.totalorder %s29, 1
      %s596 = scalar_select %p595, %s29, 1
      %s597 = smul.addr %s596, 8
      %s598 = scalar_lea.vmem %s10, %s597
      %p599 = scmp.lt.s32.totalorder %s28, 1
      %s600 = scalar_select %p599, %s28, 1
      %s601 = smul.addr %s600, 8
      %s602 = scalar_lea.vmem %s13, %s601
      %p604 = scmp.eq.s32.totalorder %s29, 0
      // Predicated region
      $region73: #{vit_forward.1} parent=71 // pred_check
        %p605 = pneg %p604
      $region74: #{vit_forward.1} parent=71 // pred_check_branch
        %607 = sbr.rel (%p605) target = $region76
      $region75: #{vit_forward.1} parent=71 // pred_region
        %v608 = vld [vmem:[%s560] sm:$0xff]
        %v609 = vld [vmem:[%s560 + $0x8] sm:$0xff]
        %v610 = vld [vmem:[%s560 + $0x10] sm:$0xff]
        %v611 = vld [vmem:[%s2] sm:$0xf]
        %v612 = vld [vmem:[%s2 + $0x4] sm:$0xf]
        %v613 = vld [vmem:[%s2 + $0x8] sm:$0xf]
        %v614 = vld [vmem:[%s2 + $0xc] sm:$0xf]
        %v615 = vld [vmem:[%s2 + $0x10] sm:$0xf]
        %v616 = vld [vmem:[%s2 + $0x14] sm:$0xf]
        %v617 = vld [vmem:[%s2 + $0x18] sm:$0xf]
        %v618 = vld [vmem:[%s2 + $0x1c] sm:$0xf]
        %v619 = vld [vmem:[%s2 + $0x20] sm:$0xf]
        %v620 = vld [vmem:[%s2 + $0x24] sm:$0xf]
        %v621 = vld [vmem:[%s2 + $0x28] sm:$0xf]
        %v622 = vld [vmem:[%s2 + $0x2c] sm:$0xf]
        %v623 = vld [vmem:[%s2 + $0x30] sm:$0xf]
        %v624 = vld [vmem:[%s2 + $0x34] sm:$0xf]
        %v625 = vld [vmem:[%s2 + $0x38] sm:$0xf]
        %v626 = vld [vmem:[%s2 + $0x3c] sm:$0xf]
        %v627 = vpack.c.bf16 %v609, %v608
        %v628 = vpack.c.bf16 %v610, %v610
        %v629 = vld [vmem:[%s566] sm:$0xff]
        %v630 = vld [vmem:[%s566 + $0x8] sm:$0xff]
        %v631 = vld [vmem:[%s566 + $0x10] sm:$0xff]
        %v648 = vunpack.c.l.b16 %v611
        %v649 = vunpack.c.l.b16 %v612
        %v650 = vunpack.c.l.b16 %v613
        %v651 = vunpack.c.l.b16 %v614
        %v652 = vunpack.c.l.b16 %v615
        %v653 = vunpack.c.l.b16 %v616
        %v654 = vunpack.c.l.b16 %v617
        %v655 = vunpack.c.l.b16 %v618
        %v656 = vunpack.c.l.b16 %v619
        %v657 = vunpack.c.l.b16 %v620
        %v658 = vunpack.c.l.b16 %v621
        %v659 = vunpack.c.l.b16 %v622
        %v660 = vunpack.c.l.b16 %v623
        %v661 = vunpack.c.l.b16 %v624
        %v662 = vunpack.c.l.b16 %v625
        %v663 = vunpack.c.l.b16 %v626
        %v664 = vpack.c.b16 %v649, %v648
        %v665 = vpack.c.b16 %v651, %v650
        %v666 = vpack.c.b16 %v653, %v652
        %v667 = vpack.c.b16 %v655, %v654
        %v668 = vpack.c.b16 %v657, %v656
        %v669 = vpack.c.b16 %v659, %v658
        %v670 = vpack.c.b16 %v661, %v660
        %v671 = vpack.c.b16 %v663, %v662
        %680 = vmatprep.subr.bf16.mxu0 0
        %681 = vmatpush1.bf16.msra.mxu0 %v664
        %682 = vmatprep.subr.bf16.mxu0 0
        %683 = vmatpush1.bf16.msra.mxu0 %v665
        %684 = vmatprep.subr.bf16.mxu0 0
        %685 = vmatpush1.bf16.msra.mxu0 %v666
        %686 = vmatprep.subr.bf16.mxu0 0
        %687 = vmatpush1.bf16.msra.mxu0 %v667
        %688 = vmatprep.subr.bf16.mxu0 0
        %689 = vmatpush1.bf16.msra.mxu0 %v668
        %690 = vmatprep.subr.bf16.mxu0 0
        %691 = vmatpush1.bf16.msra.mxu0 %v669
        %692 = vmatprep.subr.bf16.mxu0 0
        %693 = vmatpush1.bf16.msra.mxu0 %v670
        %694 = vmatprep.subr.bf16.mxu0 0
        %695 = vmatpush1.bf16.msra.mxu0 %v671
        %696 = vmatprep.subr.bf16.mxu0 0
        %697 = vmatpush1.bf16.msra.mxu0 0
        %698 = vmatprep.subr.bf16.mxu0 0
        %699 = vmatpush1.bf16.msra.mxu0 0
        %700 = vmatprep.subr.bf16.mxu0 0
        %701 = vmatpush1.bf16.msra.mxu0 0
        %702 = vmatprep.subr.bf16.mxu0 0
        %703 = vmatpush1.bf16.msra.mxu0 0
        %704 = vmatprep.subr.bf16.mxu0 0
        %705 = vmatpush1.bf16.msra.mxu0 0
        %706 = vmatprep.subr.bf16.mxu0 0
        %707 = vmatpush1.bf16.msra.mxu0 0
        %708 = vmatprep.subr.bf16.mxu0 0
        %709 = vmatpush1.bf16.msra.mxu0 0
        %710 = vmatprep.subr.bf16.mxu0 0
        %711 = vmatpush1.bf16.msra.mxu0 0
        %712 = vmatprep.mubr.bf16.mxu0 0
        %713 = vmatmul.mubr.bf16.gmra.mrb[0].mxu0 %v627
        %v714 = vpop.f32.mrb[0].mxu0
        %v715 = vadd.f32 %v629, %v714
        %v716 = vpop.f32.mrb[0].mxu0
        %v717 = vpop.f32.mrb[0].mxu0
        %v718 = vadd.f32 %v630, %v717
        %v719 = vpop.f32.mrb[0].mxu0
        %720 = vmatprep.mubr.bf16.mxu0 0
        %721 = vmatmul.mubr.bf16.gmra.mrb[0].mxu0 %v628
        %v722 = vpop.f32.mrb[0].mxu0
        %v723 = vadd.f32 %v631, %v722
        %v724 = vpop.f32.mrb[0].mxu0
        %v725 = vpop.f32.mrb[0].mxu0
        %v726 = vpop.f32.mrb[0].mxu0
        %727 = vdwg.mxu0
        %728 = vst [vmem:[#allocation2] sm:$0xff] %v715
        %729 = vst [vmem:[#allocation2 + $0x8] sm:$0xff] %v718
        %730 = vst [vmem:[#allocation2 + $0x10] sm:$0xff] %v723
      $region76: #{vit_forward.1} parent=71 // pred_fallthru
        _
      %v731 = vld [vmem:[#allocation2] sm:$0xff]
      %v732 = vld [vmem:[#allocation2 + $0x8] sm:$0xff]
      %v733 = vld [vmem:[#allocation2 + $0x10] sm:$0xff]
      %v734 = vld [vmem:[%s598] sm:$0xff]
      %v735 = vld [vmem:[%s572] sm:$0xff]
      %v736 = vld [vmem:[%s572 + $0x8] sm:$0xf]
      %v737 = vld [vmem:[%s572 + $0xc] sm:$0xff]
      %v738 = vld [vmem:[%s572 + $0x14] sm:$0xf]
      %v739 = vld [vmem:[%s572 + $0x18] sm:$0xff]
      %v740 = vld [vmem:[%s572 + $0x20] sm:$0xf]
      %v741 = vld [vmem:[%s572 + $0x24] sm:$0xff]
      %v742 = vld [vmem:[%s572 + $0x2c] sm:$0xf]
      %v743 = vld [vmem:[%s572 + $0x30] sm:$0xff]
      %v744 = vld [vmem:[%s572 + $0x38] sm:$0xf]
      %v745 = vld [vmem:[%s572 + $0x3c] sm:$0xff]
      %v746 = vld [vmem:[%s572 + $0x44] sm:$0xf]
      %v747 = vld [vmem:[%s572 + $0x48] sm:$0xff]
      %v748 = vld [vmem:[%s572 + $0x50] sm:$0xf]
      %v749 = vld [vmem:[%s572 + $0x54] sm:$0xff]
      %v750 = vld [vmem:[%s572 + $0x5c] sm:$0xf]
      %v751 = vld [vmem:[%s572 + $0x60] sm:$0xff]
      %v752 = vld [vmem:[%s572 + $0x68] sm:$0xf]
      %v753 = vld [vmem:[%s572 + $0x6c] sm:$0xff]
      %v754 = vld [vmem:[%s572 + $0x74] sm:$0xf]
      %v755 = vld [vmem:[%s572 + $0x78] sm:$0xff]
      %v756 = vld [vmem:[%s572 + $0x80] sm:$0xf]
      %v757 = vld [vmem:[%s572 + $0x84] sm:$0xff]
      %v758 = vld [vmem:[%s572 + $0x8c] sm:$0xf]
      %v759 = vld [vmem:[%s572 + $0x90] sm:$0xff]
      %v760 = vld [vmem:[%s572 + $0x98] sm:$0xf]
      %v761 = vld [vmem:[%s572 + $0x9c] sm:$0xff]
      %v762 = vld [vmem:[%s572 + $0xa4] sm:$0xf]
      %v763 = vld [vmem:[%s572 + $0xa8] sm:$0xff]
      %v764 = vld [vmem:[%s572 + $0xb0] sm:$0xf]
      %v765 = vld [vmem:[%s572 + $0xb4] sm:$0xff]
      %v766 = vld [vmem:[%s572 + $0xbc] sm:$0xf]
      %v767 = vpack.c.bf16 %v732, %v731
      %v768 = vpack.c.bf16 %v733, %v733
      %v769 = vld [vmem:[%s576] sm:$0x7]
      %v771 = vlaneseq
      %v772 = vshrl.u32 %v771, 7
      %v773 = vsub.s32 0, %v772
      %v774 = vrot.slane %v769, %v773
      %v775 = vlaneseq
      %v776 = vshrl.u32 %v775, 7
      %v777 = vsub.s32 1, %v776
      %v778 = vrot.slane %v769, %v777
      %v779 = vlaneseq
      %v780 = vshrl.u32 %v779, 7
      %v781 = vsub.s32 2, %v780
      %v782 = vrot.slane %v769, %v781
      %v818 = vunpack.c.l.b16 %v735
      %v819 = vunpack.c.h.b16 %v735
      %v820 = vunpack.c.l.b16 %v736
      %v821 = vunpack.c.l.b16 %v737
      %v822 = vunpack.c.h.b16 %v737
      %v823 = vunpack.c.l.b16 %v738
      %v824 = vunpack.c.l.b16 %v739
      %v825 = vunpack.c.h.b16 %v739
      %v826 = vunpack.c.l.b16 %v740
      %v827 = vunpack.c.l.b16 %v741
      %v828 = vunpack.c.h.b16 %v741
      %v829 = vunpack.c.l.b16 %v742
      %v830 = vunpack.c.l.b16 %v743
      %v831 = vunpack.c.h.b16 %v743
      %v832 = vunpack.c.l.b16 %v744
      %v833 = vunpack.c.l.b16 %v745
      %v834 = vunpack.c.h.b16 %v745
      %v835 = vunpack.c.l.b16 %v746
      %v836 = vunpack.c.l.b16 %v747
      %v837 = vunpack.c.h.b16 %v747
      %v838 = vunpack.c.l.b16 %v748
      %v839 = vunpack.c.l.b16 %v749
      %v840 = vunpack.c.h.b16 %v749
      %v841 = vunpack.c.l.b16 %v750
      %v842 = vunpack.c.l.b16 %v751
      %v843 = vunpack.c.h.b16 %v751
      %v844 = vunpack.c.l.b16 %v752
      %v845 = vunpack.c.l.b16 %v753
      %v846 = vunpack.c.h.b16 %v753
      %v847 = vunpack.c.l.b16 %v754
      %v848 = vunpack.c.l.b16 %v755
      %v849 = vunpack.c.h.b16 %v755
      %v850 = vunpack.c.l.b16 %v756
      %v851 = vunpack.c.l.b16 %v757
      %v852 = vunpack.c.h.b16 %v757
      %v853 = vunpack.c.l.b16 %v758
      %v854 = vunpack.c.l.b16 %v759
      %v855 = vunpack.c.h.b16 %v759
      %v856 = vunpack.c.l.b16 %v760
      %v857 = vunpack.c.l.b16 %v761
      %v858 = vunpack.c.h.b16 %v761
      %v859 = vunpack.c.l.b16 %v762
      %v860 = vunpack.c.l.b16 %v763
      %v861 = vunpack.c.h.b16 %v763
      %v862 = vunpack.c.l.b16 %v764
      %v863 = vunpack.c.l.b16 %v765
      %v864 = vunpack.c.h.b16 %v765
      %v865 = vunpack.c.l.b16 %v766
      %v866 = vpack.c.b16 %v821, %v818
      %v867 = vpack.c.b16 %v822, %v819
      %v868 = vpack.c.b16 %v823, %v820
      %v869 = vpack.c.b16 %v827, %v824
      %v870 = vpack.c.b16 %v828, %v825
      %v871 = vpack.c.b16 %v829, %v826
      %v872 = vpack.c.b16 %v833, %v830
      %v873 = vpack.c.b16 %v834, %v831
      %v874 = vpack.c.b16 %v835, %v832
      %v875 = vpack.c.b16 %v839, %v836
      %v876 = vpack.c.b16 %v840, %v837
      %v877 = vpack.c.b16 %v841, %v838
      %v878 = vpack.c.b16 %v845, %v842
      %v879 = vpack.c.b16 %v846, %v843
      %v880 = vpack.c.b16 %v847, %v844
      %v881 = vpack.c.b16 %v851, %v848
      %v882 = vpack.c.b16 %v852, %v849
      %v883 = vpack.c.b16 %v853, %v850
      %v884 = vpack.c.b16 %v857, %v854
      %v885 = vpack.c.b16 %v858, %v855
      %v886 = vpack.c.b16 %v859, %v856
      %v887 = vpack.c.b16 %v863, %v860
      %v888 = vpack.c.b16 %v864, %v861
      %v889 = vpack.c.b16 %v865, %v862
      %914 = vmatprep.subr.bf16.mxu0 %v867
      %915 = vmatpush1.bf16.msra.mxu0 %v866
      %916 = vmatprep.subr.bf16.mxu0 %v870
      %917 = vmatpush1.bf16.msra.mxu0 %v869
      %918 = vmatprep.subr.bf16.mxu0 %v873
      %919 = vmatpush1.bf16.msra.mxu0 %v872
      %920 = vmatprep.subr.bf16.mxu0 %v876
      %921 = vmatpush1.bf16.msra.mxu0 %v875
      %922 = vmatprep.subr.bf16.mxu0 %v879
      %923 = vmatpush1.bf16.msra.mxu0 %v878
      %924 = vmatprep.subr.bf16.mxu0 %v882
      %925 = vmatpush1.bf16.msra.mxu0 %v881
      %926 = vmatprep.subr.bf16.mxu0 %v885
      %927 = vmatpush1.bf16.msra.mxu0 %v884
      %928 = vmatprep.subr.bf16.mxu0 %v888
      %929 = vmatpush1.bf16.msra.mxu0 %v887
      %930 = vmatprep.subr.bf16.mxu0 0
      %931 = vmatpush1.bf16.msra.mxu0 0
      %932 = vmatprep.subr.bf16.mxu0 0
      %933 = vmatpush1.bf16.msra.mxu0 0
      %934 = vmatprep.subr.bf16.mxu0 0
      %935 = vmatpush1.bf16.msra.mxu0 0
      %936 = vmatprep.subr.bf16.mxu0 0
      %937 = vmatpush1.bf16.msra.mxu0 0
      %938 = vmatprep.subr.bf16.mxu0 0
      %939 = vmatpush1.bf16.msra.mxu0 0
      %940 = vmatprep.subr.bf16.mxu0 0
      %941 = vmatpush1.bf16.msra.mxu0 0
      %942 = vmatprep.subr.bf16.mxu0 0
      %943 = vmatpush1.bf16.msra.mxu0 0
      %944 = vmatprep.subr.bf16.mxu0 0
      %945 = vmatpush1.bf16.msra.mxu0 0
      %946 = vmatprep.mubr.bf16.mxu0 0
      %947 = vmatmul.mubr.bf16.gmra.mrb[0].mxu0 %v767
      %v948 = vpop.f32.mrb[0].mxu0
      %v949 = vadd.f32 %v774, %v948
      %v950 = vpop.f32.mrb[0].mxu0
      %v951 = vadd.f32 %v778, %v950
      %v952 = vpop.f32.mrb[0].mxu0
      %v953 = vadd.f32 %v774, %v952
      %v954 = vpop.f32.mrb[0].mxu0
      %v955 = vadd.f32 %v778, %v954
      %956 = vmatprep.mubr.bf16.mxu0 0
      %957 = vmatmul.mubr.bf16.gmra.mrb[0].mxu0 %v768
      %v958 = vpop.f32.mrb[0].mxu0
      %v959 = vadd.f32 %v774, %v958
      %v960 = vpop.f32.mrb[0].mxu0
      %v961 = vadd.f32 %v778, %v960
      %v962 = vpop.f32.mrb[0].mxu0
      %v963 = vpop.f32.mrb[0].mxu0
      %964 = vdwg.mxu0
      %965 = vmatprep.subr.bf16.mxu0 0
      %966 = vmatpush1.bf16.msra.mxu0 %v868
      %967 = vmatprep.subr.bf16.mxu0 0
      %968 = vmatpush1.bf16.msra.mxu0 %v871
      %969 = vmatprep.subr.bf16.mxu0 0
      %970 = vmatpush1.bf16.msra.mxu0 %v874
      %971 = vmatprep.subr.bf16.mxu0 0
      %972 = vmatpush1.bf16.msra.mxu0 %v877
      %973 = vmatprep.subr.bf16.mxu0 0
      %974 = vmatpush1.bf16.msra.mxu0 %v880
      %975 = vmatprep.subr.bf16.mxu0 0
      %976 = vmatpush1.bf16.msra.mxu0 %v883
      %977 = vmatprep.subr.bf16.mxu0 0
      %978 = vmatpush1.bf16.msra.mxu0 %v886
      %979 = vmatprep.subr.bf16.mxu0 0
      %980 = vmatpush1.bf16.msra.mxu0 %v889
      %981 = vmatprep.subr.bf16.mxu0 0
      %982 = vmatpush1.bf16.msra.mxu0 0
      %983 = vmatprep.subr.bf16.mxu0 0
      %984 = vmatpush1.bf16.msra.mxu0 0
      %985 = vmatprep.subr.bf16.mxu0 0
      %986 = vmatpush1.bf16.msra.mxu0 0
      %987 = vmatprep.subr.bf16.mxu0 0
      %988 = vmatpush1.bf16.msra.mxu0 0
      %989 = vmatprep.subr.bf16.mxu0 0
      %990 = vmatpush1.bf16.msra.mxu0 0
      %991 = vmatprep.subr.bf16.mxu0 0
      %992 = vmatpush1.bf16.msra.mxu0 0
      %993 = vmatprep.subr.bf16.mxu0 0
      %994 = vmatpush1.bf16.msra.mxu0 0
      %995 = vmatprep.subr.bf16.mxu0 0
      %996 = vmatpush1.bf16.msra.mxu0 0
      %997 = vmatprep.mubr.bf16.mxu0 0
      %998 = vmatmul.mubr.bf16.gmra.mrb[0].mxu0 %v767
      %v999 = vpop.f32.mrb[0].mxu0
      %v1000 = vadd.f32 %v782, %v999
      %v1001 = vpop.f32.mrb[0].mxu0
      %v1002 = vpop.f32.mrb[0].mxu0
      %v1003 = vadd.f32 %v782, %v1002
      %v1004 = vpop.f32.mrb[0].mxu0
      %1005 = vmatprep.mubr.bf16.mxu0 0
      %1006 = vmatmul.mubr.bf16.gmra.mrb[0].mxu0 %v768
      %v1007 = vpop.f32.mrb[0].mxu0
      %v1008 = vadd.f32 %v782, %v1007
      %v1009 = vpop.f32.mrb[0].mxu0
      %v1010 = vpop.f32.mrb[0].mxu0
      %v1011 = vpop.f32.mrb[0].mxu0
      %1012 = vdwg.mxu0
      %v1013 = vld [vmem:[%s3] sm:$0xff]
      %v1014 = vld [vmem:[%s3 + $0x8] sm:$0xff]
      %v1015 = vld [vmem:[%s3 + $0x10] sm:$0xff]
      %v1016 = vpack.c.bf16 %v953, %v949
      %v1017 = vpack.c.bf16 %v959, %v959
      %v1018 = vpack.c.bf16 %v955, %v951
      %v1019 = vpack.c.bf16 %v961, %v961
      %v1020 = vpack.c.bf16 %v1003, %v1000
      %v1021 = vpack.c.bf16 %v1008, %v1008
      %vm1022 = vcmask 64512
      %v1024 = vsel %vm1022, %v1016, 0
      %v1027 = vsel %vm1022, %v1017, 0
      %v1030 = vsel %vm1022, %v1018, 0
      %v1033 = vsel %vm1022, %v1019, 0
      %1035 = vmatprep.subr.bf16.mxu0 0
      %1036 = vmatpush1.bf16.xpose.msra.mxu0 %v1030
      %1037 = vmatprep.subr.bf16.mxu0 0
      %1038 = vmatpush1.bf16.xpose.msra.mxu0 %v1033
      %1039 = vmatprep.subr.bf16.mxu0 0
      %1040 = vmatpush1.bf16.xpose.msra.mxu0 0
      %1041 = vmatprep.subr.bf16.mxu0 0
      %1042 = vmatpush1.bf16.xpose.msra.mxu0 0
      %1043 = vmatprep.subr.bf16.mxu0 0
      %1044 = vmatpush1.bf16.xpose.msra.mxu0 0
      %1045 = vmatprep.subr.bf16.mxu0 0
      %1046 = vmatpush1.bf16.xpose.msra.mxu0 0
      %1047 = vmatprep.subr.bf16.mxu0 0
      %1048 = vmatpush1.bf16.xpose.msra.mxu0 0
      %1049 = vmatprep.subr.bf16.mxu0 0
      %1050 = vmatpush1.bf16.xpose.msra.mxu0 0
      %1051 = vmatprep.subr.bf16.mxu0 0
      %1052 = vmatpush1.bf16.xpose.msra.mxu0 0
      %1053 = vmatprep.subr.bf16.mxu0 0
      %1054 = vmatpush1.bf16.xpose.msra.mxu0 0
      %1055 = vmatprep.subr.bf16.mxu0 0
      %1056 = vmatpush1.bf16.xpose.msra.mxu0 0
      %1057 = vmatprep.subr.bf16.mxu0 0
      %1058 = vmatpush1.bf16.xpose.msra.mxu0 0
      %1059 = vmatprep.subr.bf16.mxu0 0
      %1060 = vmatpush1.bf16.xpose.msra.mxu0 0
      %1061 = vmatprep.subr.bf16.mxu0 0
      %1062 = vmatpush1.bf16.xpose.msra.mxu0 0
      %1063 = vmatprep.subr.bf16.mxu0 0
      %1064 = vmatpush1.bf16.xpose.msra.mxu0 0
      %1065 = vmatprep.subr.bf16.mxu0 0
      %1066 = vmatpush1.bf16.xpose.msra.mxu0 0
      %1067 = vmatprep.mubr.bf16.mxu0 0
      %1068 = vmatmul.mubr.bf16.gmra.mrb[0].mxu0 %v1024
      %v1069 = vpop.f32.mrb[0].mxu0
      %v1070 = vadd.f32 %v1013, %v1069
      %v1071 = vpop.f32.mrb[0].mxu0
      %v1072 = vpop.f32.mrb[0].mxu0
      %v1073 = vadd.f32 %v1014, %v1072
      %v1074 = vpop.f32.mrb[0].mxu0
      %1075 = vmatprep.mubr.bf16.mxu0 0
      %1076 = vmatmul.mubr.bf16.gmra.mrb[0].mxu0 %v1027
      %v1077 = vpop.f32.mrb[0].mxu0
      %v1078 = vadd.f32 %v1015, %v1077
      %v1079 = vpop.f32.mrb[0].mxu0
      %v1080 = vpop.f32.mrb[0].mxu0
      %v1081 = vpop.f32.mrb[0].mxu0
      %1082 = vdwg.mxu0
      %vm1083 = vcmask 195584
      %v1084 = vsel %vm1083, %v1070, -inf
      %1085 = vmax.xlane.f32.xlu0 %v1084
      %v1086 = vpop.xlane.xlu0 %1085
      %v1087 = vsel %vm1083, %v1073, -inf
      %1088 = vmax.xlane.f32.xlu0 %v1087
      %v1089 = vpop.xlane.xlu0 %1088
      %v1090 = vsel %vm1083, %v1078, -inf
      %1091 = vmax.xlane.f32.xlu0 %v1090
      %v1092 = vpop.xlane.xlu0 %1091
      %v1093 = vsub.f32 %v1070, %v1086
      %v1094 = vsub.f32 %v1073, %v1089
      %v1095 = vsub.f32 %v1078, %v1092
      %v1096 = vmul.f32 %v1093, 1.442695
      %v1097 = vpow.pop %v1096
      %v1098 = vmul.f32 %v1094, 1.442695
      %v1099 = vpow.pop %v1098
      %v1100 = vmul.f32 %v1095, 1.442695
      %v1101 = vpow.pop %v1100
      %v1102 = vsel %vm1083, %v1097, 0.0
      %1103 = vadd.xlane.f32.xlu0 %v1102
      %v1104 = vpop.xlane.xlu0 %1103
      %v1105 = vsel %vm1083, %v1099, 0.0
      %1106 = vadd.xlane.f32.xlu0 %v1105
      %v1107 = vpop.xlane.xlu0 %1106
      %v1108 = vsel %vm1083, %v1101, 0.0
      %1109 = vadd.xlane.f32.xlu0 %v1108
      %v1110 = vpop.xlane.xlu0 %1109
      %v1111 = vrcp.pop %v1104
      %v1112 = vrcp.pop %v1107
      %v1113 = vrcp.pop %v1110
      %v1114 = vmul.f32 %v1097, %v1111
      %v1115 = vmul.f32 %v1099, %v1112
      %v1116 = vmul.f32 %v1101, %v1113
      %v1117 = vpack.c.bf16 %v1115, %v1114
      %v1118 = vpack.c.bf16 %v1116, %v1116
      %v1120 = vsel %vm1083, %v1117, 0
      %v1123 = vsel %vm1083, %v1118, 0
      %vm1125 = vcmask 1043456
      %v1127 = vsel %vm1125, %v1021, 0
      %1129 = vmatprep.subr.bf16.mxu0 0
      %1130 = vmatpush1.bf16.msra.mxu0 %v1020
      %1131 = vmatprep.subr.bf16.mxu0 0
      %1132 = vmatpush1.bf16.msra.mxu0 %v1127
      %1133 = vmatprep.subr.bf16.mxu0 0
      %1134 = vmatpush1.bf16.msra.mxu0 0
      %1135 = vmatprep.subr.bf16.mxu0 0
      %1136 = vmatpush1.bf16.msra.mxu0 0
      %1137 = vmatprep.subr.bf16.mxu0 0
      %1138 = vmatpush1.bf16.msra.mxu0 0
      %1139 = vmatprep.subr.bf16.mxu0 0
      %1140 = vmatpush1.bf16.msra.mxu0 0
      %1141 = vmatprep.subr.bf16.mxu0 0
      %1142 = vmatpush1.bf16.msra.mxu0 0
      %1143 = vmatprep.subr.bf16.mxu0 0
      %1144 = vmatpush1.bf16.msra.mxu0 0
      %1145 = vmatprep.subr.bf16.mxu0 0
      %1146 = vmatpush1.bf16.msra.mxu0 0
      %1147 = vmatprep.subr.bf16.mxu0 0
      %1148 = vmatpush1.bf16.msra.mxu0 0
      %1149 = vmatprep.subr.bf16.mxu0 0
      %1150 = vmatpush1.bf16.msra.mxu0 0
      %1151 = vmatprep.subr.bf16.mxu0 0
      %1152 = vmatpush1.bf16.msra.mxu0 0
      %1153 = vmatprep.subr.bf16.mxu0 0
      %1154 = vmatpush1.bf16.msra.mxu0 0
      %1155 = vmatprep.subr.bf16.mxu0 0
      %1156 = vmatpush1.bf16.msra.mxu0 0
      %1157 = vmatprep.subr.bf16.mxu0 0
      %1158 = vmatpush1.bf16.msra.mxu0 0
      %1159 = vmatprep.subr.bf16.mxu0 0
      %1160 = vmatpush1.bf16.msra.mxu0 0
      %1161 = vmatprep.mubr.bf16.mxu0 0
      %1162 = vmatmul.mubr.bf16.gmra.mrb[0].mxu0 %v1120
      %v1163 = vpop.f32.mrb[0].mxu0
      %v1164 = vadd.f32 0.0, %v1163
      %v1165 = vpop.f32.mrb[0].mxu0
      %v1166 = vpop.f32.mrb[0].mxu0
      %v1167 = vadd.f32 0.0, %v1166
      %v1168 = vpop.f32.mrb[0].mxu0
      %1169 = vmatprep.mubr.bf16.mxu0 0
      %1170 = vmatmul.mubr.bf16.gmra.mrb[0].mxu0 %v1123
      %v1171 = vpop.f32.mrb[0].mxu0
      %v1172 = vadd.f32 0.0, %v1171
      %v1173 = vpop.f32.mrb[0].mxu0
      %v1174 = vpop.f32.mrb[0].mxu0
      %v1175 = vpop.f32.mrb[0].mxu0
      %1176 = vdwg.mxu0
      %1179 = vrot.lane.b32.xlu0 %v1016, 120
      %v1180 = vpop.permute.xlu0 %1179
      %1181 = vrot.lane.b32.xlu0 %v1017, 120
      %v1182 = vpop.permute.xlu0 %1181
      %1185 = vrot.lane.b32.xlu0 %v1018, 120
      %v1186 = vpop.permute.xlu0 %1185
      %1187 = vrot.lane.b32.xlu0 %v1019, 120
      %v1188 = vpop.permute.xlu0 %1187
      %v1190 = vsel %vm1022, %v1180, 0
      %v1193 = vsel %vm1022, %v1182, 0
      %v1196 = vsel %vm1022, %v1186, 0
      %v1199 = vsel %vm1022, %v1188, 0
      %1201 = vmatprep.subr.bf16.mxu0 0
      %1202 = vmatpush1.bf16.xpose.msra.mxu0 %v1196
      %1203 = vmatprep.subr.bf16.mxu0 0
      %1204 = vmatpush1.bf16.xpose.msra.mxu0 %v1199
      %1205 = vmatprep.subr.bf16.mxu0 0
      %1206 = vmatpush1.bf16.xpose.msra.mxu0 0
      %1207 = vmatprep.subr.bf16.mxu0 0
      %1208 = vmatpush1.bf16.xpose.msra.mxu0 0
      %1209 = vmatprep.subr.bf16.mxu0 0
      %1210 = vmatpush1.bf16.xpose.msra.mxu0 0
      %1211 = vmatprep.subr.bf16.mxu0 0
      %1212 = vmatpush1.bf16.xpose.msra.mxu0 0
      %1213 = vmatprep.subr.bf16.mxu0 0
      %1214 = vmatpush1.bf16.xpose.msra.mxu0 0
      %1215 = vmatprep.subr.bf16.mxu0 0
      %1216 = vmatpush1.bf16.xpose.msra.mxu0 0
      %1217 = vmatprep.subr.bf16.mxu0 0
      %1218 = vmatpush1.bf16.xpose.msra.mxu0 0
      %1219 = vmatprep.subr.bf16.mxu0 0
      %1220 = vmatpush1.bf16.xpose.msra.mxu0 0
      %1221 = vmatprep.subr.bf16.mxu0 0
      %1222 = vmatpush1.bf16.xpose.msra.mxu0 0
      %1223 = vmatprep.subr.bf16.mxu0 0
      %1224 = vmatpush1.bf16.xpose.msra.mxu0 0
      %1225 = vmatprep.subr.bf16.mxu0 0
      %1226 = vmatpush1.bf16.xpose.msra.mxu0 0
      %1227 = vmatprep.subr.bf16.mxu0 0
      %1228 = vmatpush1.bf16.xpose.msra.mxu0 0
      %1229 = vmatprep.subr.bf16.mxu0 0
      %1230 = vmatpush1.bf16.xpose.msra.mxu0 0
      %1231 = vmatprep.subr.bf16.mxu0 0
      %1232 = vmatpush1.bf16.xpose.msra.mxu0 0
      %1233 = vmatprep.mubr.bf16.mxu0 0
      %1234 = vmatmul.mubr.bf16.gmra.mrb[0].mxu0 %v1190
      %v1235 = vpop.f32.mrb[0].mxu0
      %v1236 = vadd.f32 %v1013, %v1235
      %v1237 = vpop.f32.mrb[0].mxu0
      %v1238 = vpop.f32.mrb[0].mxu0
      %v1239 = vadd.f32 %v1014, %v1238
      %v1240 = vpop.f32.mrb[0].mxu0
      %1241 = vmatprep.mubr.bf16.mxu0 0
      %1242 = vmatmul.mubr.bf16.gmra.mrb[0].mxu0 %v1193
      %v1243 = vpop.f32.mrb[0].mxu0
      %v1244 = vadd.f32 %v1015, %v1243
      %v1245 = vpop.f32.mrb[0].mxu0
      %v1246 = vpop.f32.mrb[0].mxu0
      %v1247 = vpop.f32.mrb[0].mxu0
      %1248 = vdwg.mxu0
      %v1249 = vsel %vm1083, %v1236, -inf
      %1250 = vmax.xlane.f32.xlu0 %v1249
      %v1251 = vpop.xlane.xlu0 %1250
      %v1252 = vsel %vm1083, %v1239, -inf
      %1253 = vmax.xlane.f32.xlu0 %v1252
      %v1254 = vpop.xlane.xlu0 %1253
      %v1255 = vsel %vm1083, %v1244, -inf
      %1256 = vmax.xlane.f32.xlu0 %v1255
      %v1257 = vpop.xlane.xlu0 %1256
      %v1258 = vsub.f32 %v1236, %v1251
      %v1259 = vsub.f32 %v1239, %v1254
      %v1260 = vsub.f32 %v1244, %v1257
      %v1261 = vmul.f32 %v1258, 1.442695
      %v1262 = vpow.pop %v1261
      %v1263 = vmul.f32 %v1259, 1.442695
      %v1264 = vpow.pop %v1263
      %v1265 = vmul.f32 %v1260, 1.442695
      %v1266 = vpow.pop %v1265
      %v1267 = vsel %vm1083, %v1262, 0.0
      %1268 = vadd.xlane.f32.xlu0 %v1267
      %v1269 = vpop.xlane.xlu0 %1268
      %v1270 = vsel %vm1083, %v1264, 0.0
      %1271 = vadd.xlane.f32.xlu0 %v1270
      %v1272 = vpop.xlane.xlu0 %1271
      %v1273 = vsel %vm1083, %v1266, 0.0
      %1274 = vadd.xlane.f32.xlu0 %v1273
      %v1275 = vpop.xlane.xlu0 %1274
      %v1276 = vrcp.pop %v1269
      %v1277 = vrcp.pop %v1272
      %v1278 = vrcp.pop %v1275
      %v1279 = vmul.f32 %v1262, %v1276
      %v1280 = vmul.f32 %v1264, %v1277
      %v1281 = vmul.f32 %v1266, %v1278
      %v1282 = vpack.c.bf16 %v1280, %v1279
      %v1283 = vpack.c.bf16 %v1281, %v1281
      %1286 = vrot.lane.b32.xlu0 %v1020, 120
      %v1287 = vpop.permute.xlu0 %1286
      %1288 = vrot.lane.b32.xlu0 %v1021, 120
      %v1289 = vpop.permute.xlu0 %1288
      %v1292 = vsel %vm1083, %v1282, 0
      %v1295 = vsel %vm1083, %v1283, 0
      %v1298 = vsel %vm1125, %v1289, 0
      %1300 = vmatprep.subr.bf16.mxu0 0
      %1301 = vmatpush1.bf16.msra.mxu0 %v1287
      %1302 = vmatprep.subr.bf16.mxu0 0
      %1303 = vmatpush1.bf16.msra.mxu0 %v1298
      %1304 = vmatprep.subr.bf16.mxu0 0
      %1305 = vmatpush1.bf16.msra.mxu0 0
      %1306 = vmatprep.subr.bf16.mxu0 0
      %1307 = vmatpush1.bf16.msra.mxu0 0
      %1308 = vmatprep.subr.bf16.mxu0 0
      %1309 = vmatpush1.bf16.msra.mxu0 0
      %1310 = vmatprep.subr.bf16.mxu0 0
      %1311 = vmatpush1.bf16.msra.mxu0 0
      %1312 = vmatprep.subr.bf16.mxu0 0
      %1313 = vmatpush1.bf16.msra.mxu0 0
      %1314 = vmatprep.subr.bf16.mxu0 0
      %1315 = vmatpush1.bf16.msra.mxu0 0
      %1316 = vmatprep.subr.bf16.mxu0 0
      %1317 = vmatpush1.bf16.msra.mxu0 0
      %1318 = vmatprep.subr.bf16.mxu0 0
      %1319 = vmatpush1.bf16.msra.mxu0 0
      %1320 = vmatprep.subr.bf16.mxu0 0
      %1321 = vmatpush1.bf16.msra.mxu0 0
      %1322 = vmatprep.subr.bf16.mxu0 0
      %1323 = vmatpush1.bf16.msra.mxu0 0
      %1324 = vmatprep.subr.bf16.mxu0 0
      %1325 = vmatpush1.bf16.msra.mxu0 0
      %1326 = vmatprep.subr.bf16.mxu0 0
      %1327 = vmatpush1.bf16.msra.mxu0 0
      %1328 = vmatprep.subr.bf16.mxu0 0
      %1329 = vmatpush1.bf16.msra.mxu0 0
      %1330 = vmatprep.subr.bf16.mxu0 0
      %1331 = vmatpush1.bf16.msra.mxu0 0
      %1332 = vmatprep.mubr.bf16.mxu0 0
      %1333 = vmatmul.mubr.bf16.gmra.mrb[0].mxu0 %v1292
      %v1334 = vpop.f32.mrb[0].mxu0
      %v1335 = vadd.f32 0.0, %v1334
      %v1336 = vpop.f32.mrb[0].mxu0
      %v1337 = vpop.f32.mrb[0].mxu0
      %v1338 = vadd.f32 0.0, %v1337
      %v1339 = vpop.f32.mrb[0].mxu0
      %1340 = vmatprep.mubr.bf16.mxu0 0
      %1341 = vmatmul.mubr.bf16.gmra.mrb[0].mxu0 %v1295
      %v1342 = vpop.f32.mrb[0].mxu0
      %v1343 = vadd.f32 0.0, %v1342
      %v1344 = vpop.f32.mrb[0].mxu0
      %v1345 = vpop.f32.mrb[0].mxu0
      %v1346 = vpop.f32.mrb[0].mxu0
      %1347 = vdwg.mxu0
      %1348 = vrot.lane.b32.xlu0 %v1016, 112
      %v1349 = vpop.permute.xlu0 %1348
      %1350 = vrot.lane.b32.xlu0 %v1017, 112
      %v1351 = vpop.permute.xlu0 %1350
      %1352 = vrot.lane.b32.xlu0 %v1018, 112
      %v1353 = vpop.permute.xlu0 %1352
      %1354 = vrot.lane.b32.xlu0 %v1019, 112
      %v1355 = vpop.permute.xlu0 %1354
      %v1357 = vsel %vm1022, %v1349, 0
      %v1360 = vsel %vm1022, %v1351, 0
      %v1363 = vsel %vm1022, %v1353, 0
      %v1366 = vsel %vm1022, %v1355, 0
      %1368 = vmatprep.subr.bf16.mxu0 0
      %1369 = vmatpush1.bf16.xpose.msra.mxu0 %v1363
      %1370 = vmatprep.subr.bf16.mxu0 0
      %1371 = vmatpush1.bf16.xpose.msra.mxu0 %v1366
      %1372 = vmatprep.subr.bf16.mxu0 0
      %1373 = vmatpush1.bf16.xpose.msra.mxu0 0
      %1374 = vmatprep.subr.bf16.mxu0 0
      %1375 = vmatpush1.bf16.xpose.msra.mxu0 0
      %1376 = vmatprep.subr.bf16.mxu0 0
      %1377 = vmatpush1.bf16.xpose.msra.mxu0 0
      %1378 = vmatprep.subr.bf16.mxu0 0
      %1379 = vmatpush1.bf16.xpose.msra.mxu0 0
      %1380 = vmatprep.subr.bf16.mxu0 0
      %1381 = vmatpush1.bf16.xpose.msra.mxu0 0
      %1382 = vmatprep.subr.bf16.mxu0 0
      %1383 = vmatpush1.bf16.xpose.msra.mxu0 0
      %1384 = vmatprep.subr.bf16.mxu0 0
      %1385 = vmatpush1.bf16.xpose.msra.mxu0 0
      %1386 = vmatprep.subr.bf16.mxu0 0
      %1387 = vmatpush1.bf16.xpose.msra.mxu0 0
      %1388 = vmatprep.subr.bf16.mxu0 0
      %1389 = vmatpush1.bf16.xpose.msra.mxu0 0
      %1390 = vmatprep.subr.bf16.mxu0 0
      %1391 = vmatpush1.bf16.xpose.msra.mxu0 0
      %1392 = vmatprep.subr.bf16.mxu0 0
      %1393 = vmatpush1.bf16.xpose.msra.mxu0 0
      %1394 = vmatprep.subr.bf16.mxu0 0
      %1395 = vmatpush1.bf16.xpose.msra.mxu0 0
      %1396 = vmatprep.subr.bf16.mxu0 0
      %1397 = vmatpush1.bf16.xpose.msra.mxu0 0
      %1398 = vmatprep.subr.bf16.mxu0 0
      %1399 = vmatpush1.bf16.xpose.msra.mxu0 0
      %1400 = vmatprep.mubr.bf16.mxu0 0
      %1401 = vmatmul.mubr.bf16.gmra.mrb[0].mxu0 %v1357
      %v1402 = vpop.f32.mrb[0].mxu0
      %v1403 = vadd.f32 %v1013, %v1402
      %v1404 = vpop.f32.mrb[0].mxu0
      %v1405 = vpop.f32.mrb[0].mxu0
      %v1406 = vadd.f32 %v1014, %v1405
      %v1407 = vpop.f32.mrb[0].mxu0
      %1408 = vmatprep.mubr.bf16.mxu0 0
      %1409 = vmatmul.mubr.bf16.gmra.mrb[0].mxu0 %v1360
      %v1410 = vpop.f32.mrb[0].mxu0
      %v1411 = vadd.f32 %v1015, %v1410
      %v1412 = vpop.f32.mrb[0].mxu0
      %v1413 = vpop.f32.mrb[0].mxu0
      %v1414 = vpop.f32.mrb[0].mxu0
      %1415 = vdwg.mxu0
      %v1416 = vsel %vm1083, %v1403, -inf
      %1417 = vmax.xlane.f32.xlu0 %v1416
      %v1418 = vpop.xlane.xlu0 %1417
      %v1419 = vsel %vm1083, %v1406, -inf
      %1420 = vmax.xlane.f32.xlu0 %v1419
      %v1421 = vpop.xlane.xlu0 %1420
      %v1422 = vsel %vm1083, %v1411, -inf
      %1423 = vmax.xlane.f32.xlu0 %v1422
      %v1424 = vpop.xlane.xlu0 %1423
      %v1425 = vsub.f32 %v1403, %v1418
      %v1426 = vsub.f32 %v1406, %v1421
      %v1427 = vsub.f32 %v1411, %v1424
      %v1428 = vmul.f32 %v1425, 1.442695
      %v1429 = vpow.pop %v1428
      %v1430 = vmul.f32 %v1426, 1.442695
      %v1431 = vpow.pop %v1430
      %v1432 = vmul.f32 %v1427, 1.442695
      %v1433 = vpow.pop %v1432
      %v1434 = vsel %vm1083, %v1429, 0.0
      %1435 = vadd.xlane.f32.xlu0 %v1434
      %v1436 = vpop.xlane.xlu0 %1435
      %v1437 = vsel %vm1083, %v1431, 0.0
      %1438 = vadd.xlane.f32.xlu0 %v1437
      %v1439 = vpop.xlane.xlu0 %1438
      %v1440 = vsel %vm1083, %v1433, 0.0
      %1441 = vadd.xlane.f32.xlu0 %v1440
      %v1442 = vpop.xlane.xlu0 %1441
      %v1443 = vrcp.pop %v1436
      %v1444 = vrcp.pop %v1439
      %v1445 = vrcp.pop %v1442
      %v1446 = vmul.f32 %v1429, %v1443
      %v1447 = vmul.f32 %v1431, %v1444
      %v1448 = vmul.f32 %v1433, %v1445
      %v1449 = vpack.c.bf16 %v1447, %v1446
      %v1450 = vpack.c.bf16 %v1448, %v1448
      %1451 = vrot.lane.b32.xlu0 %v1020, 112
      %v1452 = vpop.permute.xlu0 %1451
      %1453 = vrot.lane.b32.xlu0 %v1021, 112
      %v1454 = vpop.permute.xlu0 %1453
      %v1457 = vsel %vm1083, %v1449, 0
      %v1460 = vsel %vm1083, %v1450, 0
      %v1463 = vsel %vm1125, %v1454, 0
      %1465 = vmatprep.subr.bf16.mxu0 0
      %1466 = vmatpush1.bf16.msra.mxu0 %v1452
      %1467 = vmatprep.subr.bf16.mxu0 0
      %1468 = vmatpush1.bf16.msra.mxu0 %v1463
      %1469 = vmatprep.subr.bf16.mxu0 0
      %1470 = vmatpush1.bf16.msra.mxu0 0
      %1471 = vmatprep.subr.bf16.mxu0 0
      %1472 = vmatpush1.bf16.msra.mxu0 0
      %1473 = vmatprep.subr.bf16.mxu0 0
      %1474 = vmatpush1.bf16.msra.mxu0 0
      %1475 = vmatprep.subr.bf16.mxu0 0
      %1476 = vmatpush1.bf16.msra.mxu0 0
      %1477 = vmatprep.subr.bf16.mxu0 0
      %1478 = vmatpush1.bf16.msra.mxu0 0
      %1479 = vmatprep.subr.bf16.mxu0 0
      %1480 = vmatpush1.bf16.msra.mxu0 0
      %1481 = vmatprep.subr.bf16.mxu0 0
      %1482 = vmatpush1.bf16.msra.mxu0 0
      %1483 = vmatprep.subr.bf16.mxu0 0
      %1484 = vmatpush1.bf16.msra.mxu0 0
      %1485 = vmatprep.subr.bf16.mxu0 0
      %1486 = vmatpush1.bf16.msra.mxu0 0
      %1487 = vmatprep.subr.bf16.mxu0 0
      %1488 = vmatpush1.bf16.msra.mxu0 0
      %1489 = vmatprep.subr.bf16.mxu0 0
      %1490 = vmatpush1.bf16.msra.mxu0 0
      %1491 = vmatprep.subr.bf16.mxu0 0
      %1492 = vmatpush1.bf16.msra.mxu0 0
      %1493 = vmatprep.subr.bf16.mxu0 0
      %1494 = vmatpush1.bf16.msra.mxu0 0
      %1495 = vmatprep.subr.bf16.mxu0 0
      %1496 = vmatpush1.bf16.msra.mxu0 0
      %1497 = vmatprep.mubr.bf16.mxu0 0
      %1498 = vmatmul.mubr.bf16.gmra.mrb[0].mxu0 %v1457
      %v1499 = vpop.f32.mrb[0].mxu0
      %v1500 = vadd.f32 0.0, %v1499
      %v1501 = vpop.f32.mrb[0].mxu0
      %v1502 = vpop.f32.mrb[0].mxu0
      %v1503 = vadd.f32 0.0, %v1502
      %v1504 = vpop.f32.mrb[0].mxu0
      %1505 = vmatprep.mubr.bf16.mxu0 0
      %1506 = vmatmul.mubr.bf16.gmra.mrb[0].mxu0 %v1460
      %v1507 = vpop.f32.mrb[0].mxu0
      %v1508 = vadd.f32 0.0, %v1507
      %v1509 = vpop.f32.mrb[0].mxu0
      %v1510 = vpop.f32.mrb[0].mxu0
      %v1511 = vpop.f32.mrb[0].mxu0
      %1512 = vdwg.mxu0
      %1513 = vrot.lane.b32.xlu0 %v1016, 104
      %v1514 = vpop.permute.xlu0 %1513
      %1515 = vrot.lane.b32.xlu0 %v1017, 104
      %v1516 = vpop.permute.xlu0 %1515
      %1517 = vrot.lane.b32.xlu0 %v1018, 104
      %v1518 = vpop.permute.xlu0 %1517
      %1519 = vrot.lane.b32.xlu0 %v1019, 104
      %v1520 = vpop.permute.xlu0 %1519
      %v1522 = vsel %vm1022, %v1514, 0
      %v1525 = vsel %vm1022, %v1516, 0
      %v1528 = vsel %vm1022, %v1518, 0
      %v1531 = vsel %vm1022, %v1520, 0
      %1533 = vmatprep.subr.bf16.mxu0 0
      %1534 = vmatpush1.bf16.xpose.msra.mxu0 %v1528
      %1535 = vmatprep.subr.bf16.mxu0 0
      %1536 = vmatpush1.bf16.xpose.msra.mxu0 %v1531
      %1537 = vmatprep.subr.bf16.mxu0 0
      %1538 = vmatpush1.bf16.xpose.msra.mxu0 0
      %1539 = vmatprep.subr.bf16.mxu0 0
      %1540 = vmatpush1.bf16.xpose.msra.mxu0 0
      %1541 = vmatprep.subr.bf16.mxu0 0
      %1542 = vmatpush1.bf16.xpose.msra.mxu0 0
      %1543 = vmatprep.subr.bf16.mxu0 0
      %1544 = vmatpush1.bf16.xpose.msra.mxu0 0
      %1545 = vmatprep.subr.bf16.mxu0 0
      %1546 = vmatpush1.bf16.xpose.msra.mxu0 0
      %1547 = vmatprep.subr.bf16.mxu0 0
      %1548 = vmatpush1.bf16.xpose.msra.mxu0 0
      %1549 = vmatprep.subr.bf16.mxu0 0
      %1550 = vmatpush1.bf16.xpose.msra.mxu0 0
      %1551 = vmatprep.subr.bf16.mxu0 0
      %1552 = vmatpush1.bf16.xpose.msra.mxu0 0
      %1553 = vmatprep.subr.bf16.mxu0 0
      %1554 = vmatpush1.bf16.xpose.msra.mxu0 0
      %1555 = vmatprep.subr.bf16.mxu0 0
      %1556 = vmatpush1.bf16.xpose.msra.mxu0 0
      %1557 = vmatprep.subr.bf16.mxu0 0
      %1558 = vmatpush1.bf16.xpose.msra.mxu0 0
      %1559 = vmatprep.subr.bf16.mxu0 0
      %1560 = vmatpush1.bf16.xpose.msra.mxu0 0
      %1561 = vmatprep.subr.bf16.mxu0 0
      %1562 = vmatpush1.bf16.xpose.msra.mxu0 0
      %1563 = vmatprep.subr.bf16.mxu0 0
      %1564 = vmatpush1.bf16.xpose.msra.mxu0 0
      %1565 = vmatprep.mubr.bf16.mxu0 0
      %1566 = vmatmul.mubr.bf16.gmra.mrb[0].mxu0 %v1522
      %v1567 = vpop.f32.mrb[0].mxu0
      %v1568 = vadd.f32 %v1013, %v1567
      %v1569 = vpop.f32.mrb[0].mxu0
      %v1570 = vpop.f32.mrb[0].mxu0
      %v1571 = vadd.f32 %v1014, %v1570
      %v1572 = vpop.f32.mrb[0].mxu0
      %1573 = vmatprep.mubr.bf16.mxu0 0
      %1574 = vmatmul.mubr.bf16.gmra.mrb[0].mxu0 %v1525
      %v1575 = vpop.f32.mrb[0].mxu0
      %v1576 = vadd.f32 %v1015, %v1575
      %v1577 = vpop.f32.mrb[0].mxu0
      %v1578 = vpop.f32.mrb[0].mxu0
      %v1579 = vpop.f32.mrb[0].mxu0
      %1580 = vdwg.mxu0
      %v1581 = vsel %vm1083, %v1568, -inf
      %1582 = vmax.xlane.f32.xlu0 %v1581
      %v1583 = vpop.xlane.xlu0 %1582
      %v1584 = vsel %vm1083, %v1571, -inf
      %1585 = vmax.xlane.f32.xlu0 %v1584
      %v1586 = vpop.xlane.xlu0 %1585
      %v1587 = vsel %vm1083, %v1576, -inf
      %1588 = vmax.xlane.f32.xlu0 %v1587
      %v1589 = vpop.xlane.xlu0 %1588
      %v1590 = vsub.f32 %v1568, %v1583
      %v1591 = vsub.f32 %v1571, %v1586
      %v1592 = vsub.f32 %v1576, %v1589
      %v1593 = vmul.f32 %v1590, 1.442695
      %v1594 = vpow.pop %v1593
      %v1595 = vmul.f32 %v1591, 1.442695
      %v1596 = vpow.pop %v1595
      %v1597 = vmul.f32 %v1592, 1.442695
      %v1598 = vpow.pop %v1597
      %v1599 = vsel %vm1083, %v1594, 0.0
      %1600 = vadd.xlane.f32.xlu0 %v1599
      %v1601 = vpop.xlane.xlu0 %1600
      %v1602 = vsel %vm1083, %v1596, 0.0
      %1603 = vadd.xlane.f32.xlu0 %v1602
      %v1604 = vpop.xlane.xlu0 %1603
      %v1605 = vsel %vm1083, %v1598, 0.0
      %1606 = vadd.xlane.f32.xlu0 %v1605
      %v1607 = vpop.xlane.xlu0 %1606
      %v1608 = vrcp.pop %v1601
      %v1609 = vrcp.pop %v1604
      %v1610 = vrcp.pop %v1607
      %v1611 = vmul.f32 %v1594, %v1608
      %v1612 = vmul.f32 %v1596, %v1609
      %v1613 = vmul.f32 %v1598, %v1610
      %v1614 = vpack.c.bf16 %v1612, %v1611
      %v1615 = vpack.c.bf16 %v1613, %v1613
      %1616 = vrot.lane.b32.xlu0 %v1020, 104
      %v1617 = vpop.permute.xlu0 %1616
      %1618 = vrot.lane.b32.xlu0 %v1021, 104
      %v1619 = vpop.permute.xlu0 %1618
      %v1622 = vsel %vm1083, %v1614, 0
      %v1625 = vsel %vm1083, %v1615, 0
      %v1628 = vsel %vm1125, %v1619, 0
      %1630 = vmatprep.subr.bf16.mxu0 0
      %1631 = vmatpush1.bf16.msra.mxu0 %v1617
      %1632 = vmatprep.subr.bf16.mxu0 0
      %1633 = vmatpush1.bf16.msra.mxu0 %v1628
      %1634 = vmatprep.subr.bf16.mxu0 0
      %1635 = vmatpush1.bf16.msra.mxu0 0
      %1636 = vmatprep.subr.bf16.mxu0 0
      %1637 = vmatpush1.bf16.msra.mxu0 0
      %1638 = vmatprep.subr.bf16.mxu0 0
      %1639 = vmatpush1.bf16.msra.mxu0 0
      %1640 = vmatprep.subr.bf16.mxu0 0
      %1641 = vmatpush1.bf16.msra.mxu0 0
      %1642 = vmatprep.subr.bf16.mxu0 0
      %1643 = vmatpush1.bf16.msra.mxu0 0
      %1644 = vmatprep.subr.bf16.mxu0 0
      %1645 = vmatpush1.bf16.msra.mxu0 0
      %1646 = vmatprep.subr.bf16.mxu0 0
      %1647 = vmatpush1.bf16.msra.mxu0 0
      %1648 = vmatprep.subr.bf16.mxu0 0
      %1649 = vmatpush1.bf16.msra.mxu0 0
      %1650 = vmatprep.subr.bf16.mxu0 0
      %1651 = vmatpush1.bf16.msra.mxu0 0
      %1652 = vmatprep.subr.bf16.mxu0 0
      %1653 = vmatpush1.bf16.msra.mxu0 0
      %1654 = vmatprep.subr.bf16.mxu0 0
      %1655 = vmatpush1.bf16.msra.mxu0 0
      %1656 = vmatprep.subr.bf16.mxu0 0
      %1657 = vmatpush1.bf16.msra.mxu0 0
      %1658 = vmatprep.subr.bf16.mxu0 0
      %1659 = vmatpush1.bf16.msra.mxu0 0
      %1660 = vmatprep.subr.bf16.mxu0 0
      %1661 = vmatpush1.bf16.msra.mxu0 0
      %1662 = vmatprep.mubr.bf16.mxu0 0
      %1663 = vmatmul.mubr.bf16.gmra.mrb[0].mxu0 %v1622
      %v1664 = vpop.f32.mrb[0].mxu0
      %v1665 = vadd.f32 0.0, %v1664
      %v1666 = vpop.f32.mrb[0].mxu0
      %v1667 = vpop.f32.mrb[0].mxu0
      %v1668 = vadd.f32 0.0, %v1667
      %v1669 = vpop.f32.mrb[0].mxu0
      %1670 = vmatprep.mubr.bf16.mxu0 0
      %1671 = vmatmul.mubr.bf16.gmra.mrb[0].mxu0 %v1625
      %v1672 = vpop.f32.mrb[0].mxu0
      %v1673 = vadd.f32 0.0, %v1672
      %v1674 = vpop.f32.mrb[0].mxu0
      %v1675 = vpop.f32.mrb[0].mxu0
      %v1676 = vpop.f32.mrb[0].mxu0
      %1677 = vdwg.mxu0
      %1681 = vrot.lane.b32.xlu0 %v1335, 8
      %v1682 = vpop.permute.xlu0 %1681
      %1683 = vrot.lane.b32.xlu0 %v1338, 8
      %v1684 = vpop.permute.xlu0 %1683
      %1685 = vrot.lane.b32.xlu0 %v1343, 8
      %v1686 = vpop.permute.xlu0 %1685
      %1693 = vrot.lane.b32.xlu0 %v1500, 16
      %v1694 = vpop.permute.xlu0 %1693
      %1695 = vrot.lane.b32.xlu0 %v1503, 16
      %v1696 = vpop.permute.xlu0 %1695
      %1697 = vrot.lane.b32.xlu0 %v1508, 16
      %v1698 = vpop.permute.xlu0 %1697
      %1705 = vrot.lane.b32.xlu0 %v1665, 24
      %v1706 = vpop.permute.xlu0 %1705
      %1707 = vrot.lane.b32.xlu0 %v1668, 24
      %v1708 = vpop.permute.xlu0 %1707
      %1709 = vrot.lane.b32.xlu0 %v1673, 24
      %v1710 = vpop.permute.xlu0 %1709
      %v1714 = vsel %vm1022, %v1164, %v1682
      %v1715 = vsel %vm1022, %v1167, %v1684
      %v1716 = vsel %vm1022, %v1172, %v1686
      %vm1717 = vcmask 130048
      %v1718 = vsel %vm1717, %v1714, %v1694
      %v1719 = vsel %vm1717, %v1715, %v1696
      %v1720 = vsel %vm1717, %v1716, %v1698
      %v1721 = vsel %vm1083, %v1718, %v1706
      %v1722 = vsel %vm1083, %v1719, %v1708
      %v1723 = vsel %vm1083, %v1720, %v1710
      %v1724 = vld [vmem:[%s581] sm:$0xf]
      %v1725 = vld [vmem:[%s581 + $0x4] sm:$0xf]
      %v1726 = vld [vmem:[%s581 + $0x8] sm:$0xf]
      %v1727 = vld [vmem:[%s581 + $0xc] sm:$0xf]
      %v1728 = vpack.c.bf16 %v1722, %v1721
      %v1729 = vpack.c.bf16 %v1723, %v1723
      %v1730 = vlaneseq
      %v1731 = vshrl.u32 %v1730, 7
      %v1732 = vsub.s32 0, %v1731
      %v1733 = vrot.slane %v734, %v1732
      %v1738 = vunpack.c.l.b16 %v1724
      %v1739 = vunpack.c.l.b16 %v1725
      %v1740 = vunpack.c.l.b16 %v1726
      %v1741 = vunpack.c.l.b16 %v1727
      %v1742 = vpack.c.b16 %v1739, %v1738
      %v1743 = vpack.c.b16 %v1741, %v1740
      %vm1746 = vcmask 261120
      %v1748 = vsel %vm1746, %v1728, 0
      %v1751 = vsel %vm1746, %v1729, 0
      %1753 = vmatprep.subr.bf16.mxu0 0
      %1754 = vmatpush1.bf16.msra.mxu0 %v1742
      %1755 = vmatprep.subr.bf16.mxu0 0
      %1756 = vmatpush1.bf16.msra.mxu0 %v1743
      %1757 = vmatprep.subr.bf16.mxu0 0
      %1758 = vmatpush1.bf16.msra.mxu0 0
      %1759 = vmatprep.subr.bf16.mxu0 0
      %1760 = vmatpush1.bf16.msra.mxu0 0
      %1761 = vmatprep.subr.bf16.mxu0 0
      %1762 = vmatpush1.bf16.msra.mxu0 0
      %1763 = vmatprep.subr.bf16.mxu0 0
      %1764 = vmatpush1.bf16.msra.mxu0 0
      %1765 = vmatprep.subr.bf16.mxu0 0
      %1766 = vmatpush1.bf16.msra.mxu0 0
      %1767 = vmatprep.subr.bf16.mxu0 0
      %1768 = vmatpush1.bf16.msra.mxu0 0
      %1769 = vmatprep.subr.bf16.mxu0 0
      %1770 = vmatpush1.bf16.msra.mxu0 0
      %1771 = vmatprep.subr.bf16.mxu0 0
      %1772 = vmatpush1.bf16.msra.mxu0 0
      %1773 = vmatprep.subr.bf16.mxu0 0
      %1774 = vmatpush1.bf16.msra.mxu0 0
      %1775 = vmatprep.subr.bf16.mxu0 0
      %1776 = vmatpush1.bf16.msra.mxu0 0
      %1777 = vmatprep.subr.bf16.mxu0 0
      %1778 = vmatpush1.bf16.msra.mxu0 0
      %1779 = vmatprep.subr.bf16.mxu0 0
      %1780 = vmatpush1.bf16.msra.mxu0 0
      %1781 = vmatprep.subr.bf16.mxu0 0
      %1782 = vmatpush1.bf16.msra.mxu0 0
      %1783 = vmatprep.subr.bf16.mxu0 0
      %1784 = vmatpush1.bf16.msra.mxu0 0
      %1785 = vmatprep.mubr.bf16.mxu0 0
      %1786 = vmatmul.mubr.bf16.gmra.mrb[0].mxu0 %v1748
      %v1787 = vpop.f32.mrb[0].mxu0
      %v1788 = vadd.f32 %v1733, %v1787
      %v1789 = vpop.f32.mrb[0].mxu0
      %v1790 = vpop.f32.mrb[0].mxu0
      %v1791 = vadd.f32 %v1733, %v1790
      %v1792 = vpop.f32.mrb[0].mxu0
      %1793 = vmatprep.mubr.bf16.mxu0 0
      %1794 = vmatmul.mubr.bf16.gmra.mrb[0].mxu0 %v1751
      %v1795 = vpop.f32.mrb[0].mxu0
      %v1796 = vadd.f32 %v1733, %v1795
      %v1797 = vpop.f32.mrb[0].mxu0
      %v1798 = vpop.f32.mrb[0].mxu0
      %v1799 = vpop.f32.mrb[0].mxu0
      %1800 = vdwg.mxu0
      %v1801 = vadd.f32 %v731, %v1788
      %v1802 = vadd.f32 %v732, %v1791
      %v1803 = vadd.f32 %v733, %v1796
      %1804 = vadd.xlane.f32.xlu0 %v1801
      %v1805 = vpop.xlane.xlu0 %1804
      %1806 = vadd.xlane.f32.xlu0 %v1802
      %v1807 = vpop.xlane.xlu0 %1806
      %1808 = vadd.xlane.f32.xlu0 %v1803
      %v1809 = vpop.xlane.xlu0 %1808
      %v1810 = vmul.f32 %v1805, 0.03125
      %v1811 = vmul.f32 %v1807, 0.03125
      %v1812 = vmul.f32 %v1809, 0.03125
      %v1813 = vmul.f32 %v1801, %v1801
      %v1814 = vmul.f32 %v1802, %v1802
      %v1815 = vmul.f32 %v1803, %v1803
      %1816 = vadd.xlane.f32.xlu0 %v1813
      %v1817 = vpop.xlane.xlu0 %1816
      %1818 = vadd.xlane.f32.xlu0 %v1814
      %v1819 = vpop.xlane.xlu0 %1818
      %1820 = vadd.xlane.f32.xlu0 %v1815
      %v1821 = vpop.xlane.xlu0 %1820
      %v1822 = vmul.f32 %v1817, 0.03125
      %v1823 = vmul.f32 %v1819, 0.03125
      %v1824 = vmul.f32 %v1821, 0.03125
      %v1825 = vmul.f32 %v1810, %v1810
      %v1826 = vmul.f32 %v1811, %v1811
      %v1827 = vmul.f32 %v1812, %v1812
      %v1828 = vsub.f32 %v1822, %v1825
      %v1829 = vsub.f32 %v1823, %v1826
      %v1830 = vsub.f32 %v1824, %v1827
      %v1831 = vsub.f32 %v1801, %v1810
      %v1832 = vsub.f32 %v1802, %v1811
      %v1833 = vsub.f32 %v1803, %v1812
      %v1834 = vadd.f32 %v1828, 1e-05
      %v1835 = vadd.f32 %v1829, 1e-05
      %v1836 = vadd.f32 %v1830, 1e-05
      %v1837 = vrsqrt.pop %v1834
      %v1838 = vrsqrt.pop %v1835
      %v1839 = vrsqrt.pop %v1836
      %v1840 = vmul.f32 %v1831, %v1837
      %v1841 = vmul.f32 %v1832, %v1838
      %v1842 = vmul.f32 %v1833, %v1839
      %v1843 = vlaneseq
      %v1844 = vshrl.u32 %v1843, 7
      %v1845 = vsub.s32 1, %v1844
      %v1846 = vrot.slane %v734, %v1845
      %v1847 = vmul.f32 %v1840, %v1846
      %v1848 = vmul.f32 %v1841, %v1846
      %v1849 = vmul.f32 %v1842, %v1846
      %v1850 = vlaneseq
      %v1851 = vshrl.u32 %v1850, 7
      %v1852 = vsub.s32 2, %v1851
      %v1853 = vrot.slane %v734, %v1852
      %v1854 = vadd.f32 %v1847, %v1853
      %v1855 = vadd.f32 %v1848, %v1853
      %v1856 = vadd.f32 %v1849, %v1853
      %v1857 = vld [vmem:[%s586] sm:$0xf]
      %v1858 = vld [vmem:[%s586 + $0x4] sm:$0xf]
      %v1859 = vld [vmem:[%s586 + $0x8] sm:$0xf]
      %v1860 = vld [vmem:[%s586 + $0xc] sm:$0xf]
      %v1861 = vld [vmem:[%s586 + $0x10] sm:$0xf]
      %v1862 = vld [vmem:[%s586 + $0x14] sm:$0xf]
      %v1863 = vld [vmem:[%s586 + $0x18] sm:$0xf]
      %v1864 = vld [vmem:[%s586 + $0x1c] sm:$0xf]
      %v1865 = vld [vmem:[%s586 + $0x20] sm:$0xf]
      %v1866 = vld [vmem:[%s586 + $0x24] sm:$0xf]
      %v1867 = vld [vmem:[%s586 + $0x28] sm:$0xf]
      %v1868 = vld [vmem:[%s586 + $0x2c] sm:$0xf]
      %v1869 = vld [vmem:[%s586 + $0x30] sm:$0xf]
      %v1870 = vld [vmem:[%s586 + $0x34] sm:$0xf]
      %v1871 = vld [vmem:[%s586 + $0x38] sm:$0xf]
      %v1872 = vld [vmem:[%s586 + $0x3c] sm:$0xf]
      %v1873 = vpack.c.bf16 %v1855, %v1854
      %v1874 = vpack.c.bf16 %v1856, %v1856
      %v1875 = vld [vmem:[%s589] sm:$0x1]
      %v1877 = vlaneseq
      %v1878 = vshrl.u32 %v1877, 7
      %v1879 = vsub.s32 0, %v1878
      %v1880 = vrot.slane %v1875, %v1879
      %v1898 = vunpack.c.l.b16 %v1857
      %v1899 = vunpack.c.l.b16 %v1858
      %v1900 = vunpack.c.l.b16 %v1859
      %v1901 = vunpack.c.l.b16 %v1860
      %v1902 = vunpack.c.l.b16 %v1861
      %v1903 = vunpack.c.l.b16 %v1862
      %v1904 = vunpack.c.l.b16 %v1863
      %v1905 = vunpack.c.l.b16 %v1864
      %v1906 = vunpack.c.l.b16 %v1865
      %v1907 = vunpack.c.l.b16 %v1866
      %v1908 = vunpack.c.l.b16 %v1867
      %v1909 = vunpack.c.l.b16 %v1868
      %v1910 = vunpack.c.l.b16 %v1869
      %v1911 = vunpack.c.l.b16 %v1870
      %v1912 = vunpack.c.l.b16 %v1871
      %v1913 = vunpack.c.l.b16 %v1872
      %v1914 = vpack.c.b16 %v1899, %v1898
      %v1915 = vpack.c.b16 %v1901, %v1900
      %v1916 = vpack.c.b16 %v1903, %v1902
      %v1917 = vpack.c.b16 %v1905, %v1904
      %v1918 = vpack.c.b16 %v1907, %v1906
      %v1919 = vpack.c.b16 %v1909, %v1908
      %v1920 = vpack.c.b16 %v1911, %v1910
      %v1921 = vpack.c.b16 %v1913, %v1912
      %1930 = vmatprep.subr.bf16.mxu0 0
      %1931 = vmatpush1.bf16.msra.mxu0 %v1914
      %1932 = vmatprep.subr.bf16.mxu0 0
      %1933 = vmatpush1.bf16.msra.mxu0 %v1915
      %1934 = vmatprep.subr.bf16.mxu0 0
      %1935 = vmatpush1.bf16.msra.mxu0 %v1916
      %1936 = vmatprep.subr.bf16.mxu0 0
      %1937 = vmatpush1.bf16.msra.mxu0 %v1917
      %1938 = vmatprep.subr.bf16.mxu0 0
      %1939 = vmatpush1.bf16.msra.mxu0 %v1918
      %1940 = vmatprep.subr.bf16.mxu0 0
      %1941 = vmatpush1.bf16.msra.mxu0 %v1919
      %1942 = vmatprep.subr.bf16.mxu0 0
      %1943 = vmatpush1.bf16.msra.mxu0 %v1920
      %1944 = vmatprep.subr.bf16.mxu0 0
      %1945 = vmatpush1.bf16.msra.mxu0 %v1921
      %1946 = vmatprep.subr.bf16.mxu0 0
      %1947 = vmatpush1.bf16.msra.mxu0 0
      %1948 = vmatprep.subr.bf16.mxu0 0
      %1949 = vmatpush1.bf16.msra.mxu0 0
      %1950 = vmatprep.subr.bf16.mxu0 0
      %1951 = vmatpush1.bf16.msra.mxu0 0
      %1952 = vmatprep.subr.bf16.mxu0 0
      %1953 = vmatpush1.bf16.msra.mxu0 0
      %1954 = vmatprep.subr.bf16.mxu0 0
      %1955 = vmatpush1.bf16.msra.mxu0 0
      %1956 = vmatprep.subr.bf16.mxu0 0
      %1957 = vmatpush1.bf16.msra.mxu0 0
      %1958 = vmatprep.subr.bf16.mxu0 0
      %1959 = vmatpush1.bf16.msra.mxu0 0
      %1960 = vmatprep.subr.bf16.mxu0 0
      %1961 = vmatpush1.bf16.msra.mxu0 0
      %1962 = vmatprep.mubr.bf16.mxu0 0
      %1963 = vmatmul.mubr.bf16.gmra.mrb[0].mxu0 %v1873
      %v1964 = vpop.f32.mrb[0].mxu0
      %v1965 = vadd.f32 %v1880, %v1964
      %v1966 = vpop.f32.mrb[0].mxu0
      %v1967 = vpop.f32.mrb[0].mxu0
      %v1968 = vadd.f32 %v1880, %v1967
      %v1969 = vpop.f32.mrb[0].mxu0
      %1970 = vmatprep.mubr.bf16.mxu0 0
      %1971 = vmatmul.mubr.bf16.gmra.mrb[0].mxu0 %v1874
      %v1972 = vpop.f32.mrb[0].mxu0
      %v1973 = vadd.f32 %v1880, %v1972
      %v1974 = vpop.f32.mrb[0].mxu0
      %v1975 = vpop.f32.mrb[0].mxu0
      %v1976 = vpop.f32.mrb[0].mxu0
      %1977 = vdwg.mxu0
      %v1978 = vmax.f32 %v1965, 0.0
      %v1979 = vmax.f32 %v1968, 0.0
      %v1980 = vmax.f32 %v1973, 0.0
      %v1981 = vld [vmem:[%s594] sm:$0xf]
      %v1982 = vld [vmem:[%s594 + $0x4] sm:$0xf]
      %v1983 = vld [vmem:[%s594 + $0x8] sm:$0xf]
      %v1984 = vld [vmem:[%s594 + $0xc] sm:$0xf]
      %v1985 = vld [vmem:[%s594 + $0x10] sm:$0xf]
      %v1986 = vld [vmem:[%s594 + $0x14] sm:$0xf]
      %v1987 = vld [vmem:[%s594 + $0x18] sm:$0xf]
      %v1988 = vld [vmem:[%s594 + $0x1c] sm:$0xf]
      %v1989 = vld [vmem:[%s594 + $0x20] sm:$0xf]
      %v1990 = vld [vmem:[%s594 + $0x24] sm:$0xf]
      %v1991 = vld [vmem:[%s594 + $0x28] sm:$0xf]
      %v1992 = vld [vmem:[%s594 + $0x2c] sm:$0xf]
      %v1993 = vld [vmem:[%s594 + $0x30] sm:$0xf]
      %v1994 = vld [vmem:[%s594 + $0x34] sm:$0xf]
      %v1995 = vld [vmem:[%s594 + $0x38] sm:$0xf]
      %v1996 = vld [vmem:[%s594 + $0x3c] sm:$0xf]
      %v1997 = vpack.c.bf16 %v1979, %v1978
      %v1998 = vpack.c.bf16 %v1980, %v1980
      %v1999 = vlaneseq
      %v2000 = vshrl.u32 %v1999, 7
      %v2001 = vsub.s32 3, %v2000
      %v2002 = vrot.slane %v734, %v2001
      %v2019 = vunpack.c.l.b16 %v1981
      %v2020 = vunpack.c.l.b16 %v1982
      %v2021 = vunpack.c.l.b16 %v1983
      %v2022 = vunpack.c.l.b16 %v1984
      %v2023 = vunpack.c.l.b16 %v1985
      %v2024 = vunpack.c.l.b16 %v1986
      %v2025 = vunpack.c.l.b16 %v1987
      %v2026 = vunpack.c.l.b16 %v1988
      %v2027 = vunpack.c.l.b16 %v1989
      %v2028 = vunpack.c.l.b16 %v1990
      %v2029 = vunpack.c.l.b16 %v1991
      %v2030 = vunpack.c.l.b16 %v1992
      %v2031 = vunpack.c.l.b16 %v1993
      %v2032 = vunpack.c.l.b16 %v1994
      %v2033 = vunpack.c.l.b16 %v1995
      %v2034 = vunpack.c.l.b16 %v1996
      %v2035 = vpack.c.b16 %v2020, %v2019
      %v2036 = vpack.c.b16 %v2022, %v2021
      %v2037 = vpack.c.b16 %v2024, %v2023
      %v2038 = vpack.c.b16 %v2026, %v2025
      %v2039 = vpack.c.b16 %v2028, %v2027
      %v2040 = vpack.c.b16 %v2030, %v2029
      %v2041 = vpack.c.b16 %v2032, %v2031
      %v2042 = vpack.c.b16 %v2034, %v2033
      %2051 = vmatprep.subr.bf16.mxu0 0
      %2052 = vmatpush1.bf16.msra.mxu0 %v2035
      %2053 = vmatprep.subr.bf16.mxu0 0
      %2054 = vmatpush1.bf16.msra.mxu0 %v2036
      %2055 = vmatprep.subr.bf16.mxu0 0
      %2056 = vmatpush1.bf16.msra.mxu0 %v2037
      %2057 = vmatprep.subr.bf16.mxu0 0
      %2058 = vmatpush1.bf16.msra.mxu0 %v2038
      %2059 = vmatprep.subr.bf16.mxu0 0
      %2060 = vmatpush1.bf16.msra.mxu0 %v2039
      %2061 = vmatprep.subr.bf16.mxu0 0
      %2062 = vmatpush1.bf16.msra.mxu0 %v2040
      %2063 = vmatprep.subr.bf16.mxu0 0
      %2064 = vmatpush1.bf16.msra.mxu0 %v2041
      %2065 = vmatprep.subr.bf16.mxu0 0
      %2066 = vmatpush1.bf16.msra.mxu0 %v2042
      %2067 = vmatprep.subr.bf16.mxu0 0
      %2068 = vmatpush1.bf16.msra.mxu0 0
      %2069 = vmatprep.subr.bf16.mxu0 0
      %2070 = vmatpush1.bf16.msra.mxu0 0
      %2071 = vmatprep.subr.bf16.mxu0 0
      %2072 = vmatpush1.bf16.msra.mxu0 0
      %2073 = vmatprep.subr.bf16.mxu0 0
      %2074 = vmatpush1.bf16.msra.mxu0 0
      %2075 = vmatprep.subr.bf16.mxu0 0
      %2076 = vmatpush1.bf16.msra.mxu0 0
      %2077 = vmatprep.subr.bf16.mxu0 0
      %2078 = vmatpush1.bf16.msra.mxu0 0
      %2079 = vmatprep.subr.bf16.mxu0 0
      %2080 = vmatpush1.bf16.msra.mxu0 0
      %2081 = vmatprep.subr.bf16.mxu0 0
      %2082 = vmatpush1.bf16.msra.mxu0 0
      %2083 = vmatprep.mubr.bf16.mxu0 0
      %2084 = vmatmul.mubr.bf16.gmra.mrb[0].mxu0 %v1997
      %v2085 = vpop.f32.mrb[0].mxu0
      %v2086 = vadd.f32 %v2002, %v2085
      %v2087 = vpop.f32.mrb[0].mxu0
      %v2088 = vpop.f32.mrb[0].mxu0
      %v2089 = vadd.f32 %v2002, %v2088
      %v2090 = vpop.f32.mrb[0].mxu0
      %2091 = vmatprep.mubr.bf16.mxu0 0
      %2092 = vmatmul.mubr.bf16.gmra.mrb[0].mxu0 %v1998
      %v2093 = vpop.f32.mrb[0].mxu0
      %v2094 = vadd.f32 %v2002, %v2093
      %v2095 = vpop.f32.mrb[0].mxu0
      %v2096 = vpop.f32.mrb[0].mxu0
      %v2097 = vpop.f32.mrb[0].mxu0
      %2098 = vdwg.mxu0
      %v2099 = vadd.f32 %v1854, %v2086
      %v2100 = vadd.f32 %v1855, %v2089
      %v2101 = vadd.f32 %v1856, %v2094
      %2102 = vadd.xlane.f32.xlu0 %v2099
      %v2103 = vpop.xlane.xlu0 %2102
      %2104 = vadd.xlane.f32.xlu0 %v2100
      %v2105 = vpop.xlane.xlu0 %2104
      %2106 = vadd.xlane.f32.xlu0 %v2101
      %v2107 = vpop.xlane.xlu0 %2106
      %v2108 = vmul.f32 %v2103, 0.03125
      %v2109 = vmul.f32 %v2105, 0.03125
      %v2110 = vmul.f32 %v2107, 0.03125
      %v2111 = vmul.f32 %v2099, %v2099
      %v2112 = vmul.f32 %v2100, %v2100
      %v2113 = vmul.f32 %v2101, %v2101
      %2114 = vadd.xlane.f32.xlu0 %v2111
      %v2115 = vpop.xlane.xlu0 %2114
      %2116 = vadd.xlane.f32.xlu0 %v2112
      %v2117 = vpop.xlane.xlu0 %2116
      %2118 = vadd.xlane.f32.xlu0 %v2113
      %v2119 = vpop.xlane.xlu0 %2118
      %v2120 = vmul.f32 %v2115, 0.03125
      %v2121 = vmul.f32 %v2117, 0.03125
      %v2122 = vmul.f32 %v2119, 0.03125
      %v2123 = vmul.f32 %v2108, %v2108
      %v2124 = vmul.f32 %v2109, %v2109
      %v2125 = vmul.f32 %v2110, %v2110
      %v2126 = vsub.f32 %v2120, %v2123
      %v2127 = vsub.f32 %v2121, %v2124
      %v2128 = vsub.f32 %v2122, %v2125
      %v2129 = vsub.f32 %v2099, %v2108
      %v2130 = vsub.f32 %v2100, %v2109
      %v2131 = vsub.f32 %v2101, %v2110
      %v2132 = vadd.f32 %v2126, 1e-05
      %v2133 = vadd.f32 %v2127, 1e-05
      %v2134 = vadd.f32 %v2128, 1e-05
      %v2135 = vrsqrt.pop %v2132
      %v2136 = vrsqrt.pop %v2133
      %v2137 = vrsqrt.pop %v2134
      %v2138 = vmul.f32 %v2129, %v2135
      %v2139 = vmul.f32 %v2130, %v2136
      %v2140 = vmul.f32 %v2131, %v2137
      %v2141 = vlaneseq
      %v2142 = vshrl.u32 %v2141, 7
      %v2143 = vsub.s32 4, %v2142
      %v2144 = vrot.slane %v734, %v2143
      %v2145 = vmul.f32 %v2138, %v2144
      %v2146 = vmul.f32 %v2139, %v2144
      %v2147 = vmul.f32 %v2140, %v2144
      %v2148 = vlaneseq
      %v2149 = vshrl.u32 %v2148, 7
      %v2150 = vsub.s32 5, %v2149
      %v2151 = vrot.slane %v734, %v2150
      %v2152 = vadd.f32 %v2145, %v2151
      %v2153 = vadd.f32 %v2146, %v2151
      %v2154 = vadd.f32 %v2147, %v2151
      %2155 = vst [vmem:[#allocation2] sm:$0xff] %v2152
      %2156 = vst [vmem:[#allocation2 + $0x8] sm:$0xff] %v2153
      %2157 = vst [vmem:[#allocation2 + $0x10] sm:$0xff] %v2154
      %p2158 = scmp.eq.s32.totalorder %s29, 1
      // Predicated region
      $region77: #{vit_forward.1} parent=71 // pred_check
        %p2159 = pneg %p2158
      $region78: #{vit_forward.1} parent=71 // pred_check_branch
        %2161 = sbr.rel (%p2159) target = $region80
      $region79: #{vit_forward.1} parent=71 // pred_region
        %v2162 = vpack.c.bf16 %v2152, %v2152
        %v2163 = vld [vmem:[%s11] sm:$0xf]
        %v2164 = vld [vmem:[%s11 + $0x4] sm:$0xf]
        %v2165 = vld [vmem:[%s11 + $0x8] sm:$0xf]
        %v2166 = vld [vmem:[%s11 + $0xc] sm:$0xf]
        %v2167 = vld [vmem:[%s11 + $0x10] sm:$0xf]
        %v2168 = vld [vmem:[%s11 + $0x14] sm:$0xf]
        %v2169 = vld [vmem:[%s11 + $0x18] sm:$0xf]
        %v2170 = vld [vmem:[%s11 + $0x1c] sm:$0xf]
        %v2171 = vld [vmem:[%s11 + $0x20] sm:$0xf]
        %v2172 = vld [vmem:[%s11 + $0x24] sm:$0xf]
        %v2173 = vld [vmem:[%s11 + $0x28] sm:$0xf]
        %v2174 = vld [vmem:[%s11 + $0x2c] sm:$0xf]
        %v2175 = vld [vmem:[%s11 + $0x30] sm:$0xf]
        %v2176 = vld [vmem:[%s11 + $0x34] sm:$0xf]
        %v2177 = vld [vmem:[%s11 + $0x38] sm:$0xf]
        %v2178 = vld [vmem:[%s11 + $0x3c] sm:$0xf]
        %v2179 = vld [vmem:[%s12] sm:$0x1]
        %v2181 = vlaneseq
        %v2182 = vshrl.u32 %v2181, 7
        %v2183 = vsub.s32 0, %v2182
        %v2184 = vrot.slane %v2179, %v2183
        %v2202 = vunpack.c.l.b16 %v2163
        %v2203 = vunpack.c.l.b16 %v2164
        %v2204 = vunpack.c.l.b16 %v2165
        %v2205 = vunpack.c.l.b16 %v2166
        %v2206 = vunpack.c.l.b16 %v2167
        %v2207 = vunpack.c.l.b16 %v2168
        %v2208 = vunpack.c.l.b16 %v2169
        %v2209 = vunpack.c.l.b16 %v2170
        %v2210 = vunpack.c.l.b16 %v2171
        %v2211 = vunpack.c.l.b16 %v2172
        %v2212 = vunpack.c.l.b16 %v2173
        %v2213 = vunpack.c.l.b16 %v2174
        %v2214 = vunpack.c.l.b16 %v2175
        %v2215 = vunpack.c.l.b16 %v2176
        %v2216 = vunpack.c.l.b16 %v2177
        %v2217 = vunpack.c.l.b16 %v2178
        %v2218 = vpack.c.b16 %v2203, %v2202
        %v2219 = vpack.c.b16 %v2205, %v2204
        %v2220 = vpack.c.b16 %v2207, %v2206
        %v2221 = vpack.c.b16 %v2209, %v2208
        %v2222 = vpack.c.b16 %v2211, %v2210
        %v2223 = vpack.c.b16 %v2213, %v2212
        %v2224 = vpack.c.b16 %v2215, %v2214
        %v2225 = vpack.c.b16 %v2217, %v2216
        %2234 = vmatprep.subr.bf16.mxu0 0
        %2235 = vmatpush1.bf16.msra.mxu0 %v2218
        %2236 = vmatprep.subr.bf16.mxu0 0
        %2237 = vmatpush1.bf16.msra.mxu0 %v2219
        %2238 = vmatprep.subr.bf16.mxu0 0
        %2239 = vmatpush1.bf16.msra.mxu0 %v2220
        %2240 = vmatprep.subr.bf16.mxu0 0
        %2241 = vmatpush1.bf16.msra.mxu0 %v2221
        %2242 = vmatprep.subr.bf16.mxu0 0
        %2243 = vmatpush1.bf16.msra.mxu0 %v2222
        %2244 = vmatprep.subr.bf16.mxu0 0
        %2245 = vmatpush1.bf16.msra.mxu0 %v2223
        %2246 = vmatprep.subr.bf16.mxu0 0
        %2247 = vmatpush1.bf16.msra.mxu0 %v2224
        %2248 = vmatprep.subr.bf16.mxu0 0
        %2249 = vmatpush1.bf16.msra.mxu0 %v2225
        %2250 = vmatprep.subr.bf16.mxu0 0
        %2251 = vmatpush1.bf16.msra.mxu0 0
        %2252 = vmatprep.subr.bf16.mxu0 0
        %2253 = vmatpush1.bf16.msra.mxu0 0
        %2254 = vmatprep.subr.bf16.mxu0 0
        %2255 = vmatpush1.bf16.msra.mxu0 0
        %2256 = vmatprep.subr.bf16.mxu0 0
        %2257 = vmatpush1.bf16.msra.mxu0 0
        %2258 = vmatprep.subr.bf16.mxu0 0
        %2259 = vmatpush1.bf16.msra.mxu0 0
        %2260 = vmatprep.subr.bf16.mxu0 0
        %2261 = vmatpush1.bf16.msra.mxu0 0
        %2262 = vmatprep.subr.bf16.mxu0 0
        %2263 = vmatpush1.bf16.msra.mxu0 0
        %2264 = vmatprep.subr.bf16.mxu0 0
        %2265 = vmatpush1.bf16.msra.mxu0 0
        %2266 = vmatprep.mubr.bf16.mxu0 0
        %2267 = vmatmul.mubr.bf16.gmra.mrb[0].mxu0 %v2162
        %v2268 = vpop.f32.mrb[0].mxu0
        %v2269 = vadd.f32 %v2184, %v2268
        %v2270 = vpop.f32.mrb[0].mxu0
        %v2271 = vpop.f32.mrb[0].mxu0
        %v2272 = vpop.f32.mrb[0].mxu0
        %2273 = vdwg.mxu0
        %2274 = vst [vmem:[%s602] sm:$0xff] %v2269
      $region80: #{vit_forward.1} parent=71 // pred_fallthru
        _
      %p2275 = scmp.lt.s32.totalorder %s28, 1
      %s2276 = scalar_select %p2275, %s28, 1
      %s2277 = smul.addr %s2276, 8
      %s2278 = scalar_lea.vmem %s13, %s2277
      // Predicated region
      $region81: #{vit_forward.1} parent=71 // pred_check
        %p2279 = pneg %p372
      $region82: #{vit_forward.1} parent=71 // pred_check_branch
        %2281 = sbr.rel (%p2279) target = $region84
      $region83: #{vit_forward.1} parent=71 // pred_region
        _
      $region84: #{vit_forward.1} parent=71 // pred_fallthru
        _
    $region72: #{vit_forward.1} parent=5 // pred_fallthru
      _
    %p2282 = scmp.le.s32.totalorder 2, %s19
    // Predicated region
    $region85: #{vit_forward.1} parent=5 // pred_check
      %p2283 = pneg %p2282
    $region86: #{vit_forward.1} parent=5 // pred_check_branch
      %2285 = sbr.rel (%p2283) target = $region88
    $region87: #{vit_forward.1} parent=5 // pred_region
      %s2286 = ssub.s32 %s19, 2
      // Predicated region
      $region89: #{vit_forward.1} parent=87 // pred_check
        %p2287 = pneg %p378
      $region90: #{vit_forward.1} parent=87 // pred_check_branch
        %2289 = sbr.rel (%p2287) target = $region92
      $region91: #{vit_forward.1} parent=87 // pred_region
        %p2290 = scmp.lt.s32.totalorder %s30, 1
        %s2291 = scalar_select %p2290, %s30, 1
        %s2292 = smul.addr %s2291, 8
        %s2293 = scalar_lea.vmem %s13, %s2292
      $region92: #{vit_forward.1} parent=87 // pred_fallthru
        _
    $region88: #{vit_forward.1} parent=5 // pred_fallthru
      _
  $region6: #{vit_forward.1} parent=0 // loop_footer
    %s23 = sadd.s32 1, %s19
  $region7: #{vit_forward.1} parent=0 // loop_footer_branch
    %18 = sbr.rel target = $region3
  $region8: #{vit_forward.1} parent=0 // loop_exit
    _

</llo_original>
